<compile_context>
chip_gen: v6e
topology: v6e:2x2x1
jax: 0.10.0
libtpu: 0.0.40
codegen_flags: <defaults>
</compile_context>

<pallas_src>
import functools

import numpy as np
import jax
import jax.numpy as jnp
from jax import lax
from jax.experimental import pallas as pl
from jax.experimental.pallas import tpu as pltpu


def _accumulated_loss_kernel(x_ref, t_ref, o_ref, *, tm):
    n, d = x_ref.shape                      # block == full array
    blk = pl.program_id(0)

    x = x_ref[...]                          # (n, d) f32
    t_col = t_ref[...]                      # (n, 1) int32 labels

    # --- squared norms, directly from x (review item 1) ---
    xx = x * x
    sq_col = jnp.sum(xx, axis=1, keepdims=True)                      # (n, 1)
    sq_row = lax.dot_general(                                        # (1, n) via MXU,
        jnp.ones((1, d), jnp.float32), xx,                           # avoids a transpose
        (((1,), (1,)), ((), ())), preferred_element_type=jnp.float32)

    ones_col = jnp.ones((n, 1), jnp.float32)                         # hoisted (no CSE in loop)
    ri = lax.broadcasted_iota(jnp.int32, (n, n), 0)
    ci = lax.broadcasted_iota(jnp.int32, (n, n), 1)
    eye = ri == ci                                                    # pins the self-compare tie
    NEG = jnp.float32(-1e30)
    nf = jnp.float32(n)

    def body(local_i, acc):
        i = blk * tm + local_i
        i_safe = jnp.minimum(i, n - 1)      # clamp padded rows (contribution zeroed below)

        # distances of row i, rebuilt from x in both orientations (MXU matvecs)
        x_row = x_ref[pl.ds(i_safe, 1), :]                                   # (1, d)
        sq_i = jnp.sum(x_row * x_row, axis=1, keepdims=True)                 # (1, 1)
        g_row = lax.dot_general(x_row, x, (((1,), (1,)), ((), ())),
                                preferred_element_type=jnp.float32)          # (1, n)
        g_col = lax.dot_general(x, x_row, (((1,), (1,)), ((), ())),
                                preferred_element_type=jnp.float32)          # (n, 1)
        d_row = jnp.sqrt(jnp.maximum(sq_row + sq_i - 2.0 * g_row, 1e-12))    # (1, n) = dist[i, :]
        d_col = jnp.sqrt(jnp.maximum(sq_col + sq_i - 2.0 * g_col, 1e-12))    # (n, 1) = dist[:, i]

        # same-label mask for row i from the raw label vector (review item 5)
        t_i = t_ref[pl.ds(i_safe, 1), :]                                     # (1, 1)
        mask_col = t_col == t_i                                              # (n, 1) bool
        mcol_f = mask_col.astype(jnp.float32)

        # ge[p, j] = dist[i, j] >= dist[i, p]; diagonal forced exactly true.
        ge_f = jnp.where(eye | (d_row >= d_col), 1.0, 0.0)                   # (n, n)

        # rank counts via MXU matvecs (exact: 0/1 inputs, f32 accumulation)
        cnt_pos = jnp.dot(ge_f, mcol_f, preferred_element_type=jnp.float32)             # (n, 1)
        cnt_neg = jnp.dot(ge_f, ones_col - mcol_f, preferred_element_type=jnp.float32)  # (n, 1)

        # per-row top-k depths, exactly torch's topk(.., size // 2)[-1]
        npos = jnp.sum(mcol_f, axis=0, keepdims=True)                        # (1, 1)
        k_ap = jnp.floor(npos * 0.5)
        k_an = jnp.floor((nf - npos) * 0.5)

        pos_ok = mask_col & (cnt_pos >= k_ap - 0.5)
        neg_ok = jnp.logical_not(mask_col) & (cnt_neg >= k_an - 0.5)
        best_ap = jnp.max(jnp.where(pos_ok, d_col, NEG), axis=0, keepdims=True)  # (1, 1)
        best_an = jnp.max(jnp.where(neg_ok, d_col, NEG), axis=0, keepdims=True)  # (1, 1)

        # renorm(2, 0, 1e-5).mul(1e5): positive per-row scale, applied to the
        # selected values only (ordering is scale-invariant).
        rn = jnp.sqrt(jnp.sum(d_col * d_col, axis=0, keepdims=True))         # (1, 1)
        scale = jnp.where(rn > 1e-5, 1e-5 / rn, 1.0) * 1e5

        contrib = scale * jnp.abs(best_an - best_ap)
        contrib = jnp.where(i < n, contrib, 0.0)
        return acc + contrib

    acc = lax.fori_loop(0, tm, body, jnp.zeros((1, 1), jnp.float32),
                        unroll=min(4, tm))
    o_ref[...] = acc.reshape(1, 1, 1)


def accumulated_loss(inputs, targets, num_instances=0, block_rows=None):
    """Pallas equivalent of AccumulatedLoss(...).forward (use_semi=False).

    `num_instances` is kept for API parity; the use_semi=False path derives the
    per-row top-k depths from the actual per-row class counts, as torch does.
    """
    del num_instances
    inputs = inputs.astype(jnp.float32)
    n, d = inputs.shape
    t_col = targets.astype(jnp.int32).reshape(n, 1)

    if block_rows is None:
        block_rows = max(1, min(8, pl.cdiv(n, 2)))
    tm = int(block_rows)
    nblk = pl.cdiv(n, tm)

    # size the scoped VMEM limit to the working set, never below the default
    est = 4 * (2 * n * d + n * n + 16 * n + 4096)
    vmem_limit = int(max(32 * 2 ** 20, min(64 * 2 ** 20, 8 * est)))

    kernel = functools.partial(_accumulated_loss_kernel, tm=tm)
    partials = pl.pallas_call(
        kernel,
        out_shape=jax.ShapeDtypeStruct((nblk, 1, 1), jnp.float32),
        grid=(nblk,),
        in_specs=[
            pl.BlockSpec((n, d), lambda b: (0, 0)),
            pl.BlockSpec((n, 1), lambda b: (0, 0)),
        ],
        out_specs=pl.BlockSpec((1, 1, 1), lambda b: (b, 0, 0)),
        compiler_params=pltpu.CompilerParams(
            dimension_semantics=("parallel",),      # 2 TCs split the row blocks on v7x
            vmem_limit_bytes=vmem_limit),
    )(inputs, t_col)

    total = jnp.sum(partials)
    # loss = log10(1 / (sum|an - ap| / n)) = log10(n / total)
    return jnp.log10(jnp.float32(n) / total)


def _reference_loss(x, targets):
    """NumPy re-implementation of the PyTorch forward (use_semi=False)."""
    x = np.asarray(x, np.float32)
    t = np.asarray(targets)
    n = x.shape[0]
    sq = (x ** 2).sum(1, keepdims=True)
    dist = sq + sq.T - 2.0 * (x @ x.T)
    dist = np.sqrt(np.clip(dist, 1e-12, None))
    mask = t[:, None] == t[None, :]
    rn = np.sqrt((dist ** 2).sum(1, keepdims=True))
    dist = dist * np.where(rn > 1e-5, 1e-5 / rn, 1.0) * 1e5
    aps, ans = [], []
    for i in range(n):
        pos = np.sort(dist[i][mask[i]])[::-1]
        neg = np.sort(dist[i][~mask[i]])[::-1]
        aps.append(pos[len(pos) // 2 - 1])
        ans.append(neg[len(neg) // 2 - 1])
    aps = np.array(aps, np.float32)
    ans = np.array(ans, np.float32)
    return np.log10(1.0 / (np.abs(ans - aps).sum() / n))


if __name__ == "__main__":
    key = jax.random.PRNGKey(0)
    n, d, K = 8, 32, 4                       # 2 identities x 4 instances
    x = jax.random.normal(key, (n, d), dtype=jnp.float32)
    targets = jnp.array([0, 0, 0, 0, 1, 1, 1, 1], dtype=jnp.int32)

    loss = accumulated_loss(x, targets, K, block_rows=4)   # grid=(2,), parallel axis
    loss = jax.block_until_ready(loss)

    ref = _reference_loss(np.asarray(x), np.asarray(targets))
    assert np.allclose(np.asarray(loss), ref, rtol=5e-3, atol=5e-3), (loss, ref)

    print("KERNEL_OK")
</pallas_src>

<mosaic_0001>
module attributes {stable_mosaic.version = 11 : i64} {
  func.func @_accumulated_loss_kernel(%arg0: i32, %arg1: memref<8x32xf32, #tpu.memory_space<vmem>>, %arg2: memref<8x1xi32, #tpu.memory_space<vmem>>, %arg3: memref<1x1x1xf32, #tpu.memory_space<vmem>>) attributes {dimension_semantics = [#tpu.dimension_semantics<parallel>], iteration_bounds = array<i64: 2>, scalar_prefetch = 0 : i64, scratch_operands = 0 : i64, tpu.core_type = #tpu.core_type<tc>, window_params = [{pipeline_mode = #tpu.pipeline_mode<synchronous>, transform_indices = @transform_0, window_bounds = array<i64: 8, 32>}, {pipeline_mode = #tpu.pipeline_mode<synchronous>, transform_indices = @transform_1, window_bounds = array<i64: 8, 1>}, {transform_indices = @transform_2, window_bounds = array<i64: 1, 1, 1>}]} {
    %c0 = arith.constant 0 : index
    %c0_0 = arith.constant 0 : index
    %0 = vector.load %arg1[%c0, %c0_0] : memref<8x32xf32, #tpu.memory_space<vmem>>, vector<8x32xf32>
    %c0_1 = arith.constant 0 : index
    %c0_2 = arith.constant 0 : index
    %1 = vector.load %arg2[%c0_1, %c0_2] : memref<8x1xi32, #tpu.memory_space<vmem>>, vector<8x1xi32>
    %2 = arith.mulf %0, %0 : vector<8x32xf32>
    %cst = arith.constant dense<0.000000e+00> : vector<8xf32>
    %3 = vector.multi_reduction <add>, %2, %cst [1] : vector<8x32xf32> to vector<8xf32>
    %4 = vector.shape_cast %3 : vector<8xf32> to vector<8x1xf32>
    %cst_3 = arith.constant 1.000000e+00 : f32
    %5 = vector.broadcast %cst_3 : f32 to vector<1x32xf32>
    %cst_4 = arith.constant dense<0.000000e+00> : vector<1x8xf32>
    %6 = tpu.matmul %5, %2, %cst_4 {dimension_numbers = #tpu.dot_dimension_numbers<[1], [1], [0], [0], [0, 0, 1, 0], [], []>} : vector<1x32xf32>, vector<8x32xf32>, vector<1x8xf32> -> vector<1x8xf32>
    %cst_5 = arith.constant 1.000000e+00 : f32
    %7 = vector.broadcast %cst_5 : f32 to vector<8x1xf32>
    %8 = tpu.iota {dimensions = array<i32: 0>} : vector<8x8xi32>
    %9 = tpu.iota {dimensions = array<i32: 1>} : vector<8x8xi32>
    %10 = arith.cmpi eq, %8, %9 : vector<8x8xi32>
    %cst_6 = arith.constant 0.000000e+00 : f32
    %11 = vector.broadcast %cst_6 : f32 to vector<1x1xf32>
    %cst_7 = arith.constant 8.000000e+00 : f32
    %cst_8 = arith.constant -1.000000e+30 : f32
    %c0_i32 = arith.constant 0 : i32
    %c4_i32 = arith.constant 4 : i32
    %12 = arith.muli %arg0, %c4_i32 : i32
    %13 = arith.addi %12, %c0_i32 : i32
    %c7_i32 = arith.constant 7 : i32
    %14 = arith.minsi %13, %c7_i32 : i32
    %15 = arith.index_cast %14 : i32 to index
    %c0_9 = arith.constant 0 : index
    %16 = vector.load %arg1[%15, %c0_9] : memref<8x32xf32, #tpu.memory_space<vmem>>, vector<1x32xf32>
    %17 = arith.mulf %16, %16 : vector<1x32xf32>
    %cst_10 = arith.constant dense<0.000000e+00> : vector<1xf32>
    %18 = vector.multi_reduction <add>, %17, %cst_10 [1] : vector<1x32xf32> to vector<1xf32>
    %19 = vector.shape_cast %18 : vector<1xf32> to vector<1x1xf32>
    %cst_11 = arith.constant dense<0.000000e+00> : vector<1x8xf32>
    %20 = tpu.matmul %16, %0, %cst_11 {dimension_numbers = #tpu.dot_dimension_numbers<[1], [1], [0], [0], [0, 0, 1, 0], [], []>} : vector<1x32xf32>, vector<8x32xf32>, vector<1x8xf32> -> vector<1x8xf32>
    %cst_12 = arith.constant dense<0.000000e+00> : vector<8x1xf32>
    %21 = tpu.matmul %0, %16, %cst_12 {dimension_numbers = #tpu.dot_dimension_numbers<[1], [1], [0], [0], [0, 0, 1, 0], [], []>} : vector<8x32xf32>, vector<1x32xf32>, vector<8x1xf32> -> vector<8x1xf32>
    %22 = vector.broadcast %19 : vector<1x1xf32> to vector<1x8xf32>
    %23 = arith.addf %6, %22 : vector<1x8xf32>
    %cst_13 = arith.constant 2.000000e+00 : f32
    %24 = vector.broadcast %cst_13 : f32 to vector<1x8xf32>
    %25 = arith.mulf %24, %20 : vector<1x8xf32>
    %26 = arith.subf %23, %25 : vector<1x8xf32>
    %cst_14 = arith.constant 9.99999996E-13 : f32
    %27 = vector.broadcast %cst_14 : f32 to vector<1x8xf32>
    %28 = arith.maximumf %26, %27 : vector<1x8xf32>
    %29 = math.sqrt %28 : vector<1x8xf32>
    %30 = vector.broadcast %19 : vector<1x1xf32> to vector<8x1xf32>
    %31 = arith.addf %4, %30 : vector<8x1xf32>
    %cst_15 = arith.constant 2.000000e+00 : f32
    %32 = vector.broadcast %cst_15 : f32 to vector<8x1xf32>
    %33 = arith.mulf %32, %21 : vector<8x1xf32>
    %34 = arith.subf %31, %33 : vector<8x1xf32>
    %cst_16 = arith.constant 9.99999996E-13 : f32
    %35 = vector.broadcast %cst_16 : f32 to vector<8x1xf32>
    %36 = arith.maximumf %34, %35 : vector<8x1xf32>
    %37 = math.sqrt %36 : vector<8x1xf32>
    %38 = arith.index_cast %14 : i32 to index
    %c0_17 = arith.constant 0 : index
    %39 = vector.load %arg2[%38, %c0_17] : memref<8x1xi32, #tpu.memory_space<vmem>>, vector<1x1xi32>
    %40 = vector.broadcast %39 : vector<1x1xi32> to vector<8x1xi32>
    %41 = arith.cmpi eq, %1, %40 : vector<8x1xi32>
    %42 = arith.extui %41 : vector<8x1xi1> to vector<8x1xi32>
    %43 = arith.sitofp %42 : vector<8x1xi32> to vector<8x1xf32>
    %44 = vector.broadcast %29 : vector<1x8xf32> to vector<8x8xf32>
    %45 = vector.broadcast %37 : vector<8x1xf32> to vector<8x8xf32>
    %46 = arith.cmpf oge, %44, %45 : vector<8x8xf32>
    %47 = arith.ori %10, %46 : vector<8x8xi1>
    %cst_18 = arith.constant 1.000000e+00 : f32
    %cst_19 = arith.constant 0.000000e+00 : f32
    %48 = vector.broadcast %cst_18 : f32 to vector<8x8xf32>
    %49 = vector.broadcast %cst_19 : f32 to vector<8x8xf32>
    %50 = arith.select %47, %48, %49 : vector<8x8xi1>, vector<8x8xf32>
    %cst_20 = arith.constant dense<0.000000e+00> : vector<8x1xf32>
    %51 = tpu.matmul %50, %43, %cst_20 {dimension_numbers = #tpu.dot_dimension_numbers<[1], [0], [0], [1], [0, 0, 1, 1], [], []>} : vector<8x8xf32>, vector<8x1xf32>, vector<8x1xf32> -> vector<8x1xf32>
    %52 = arith.subf %7, %43 : vector<8x1xf32>
    %cst_21 = arith.constant dense<0.000000e+00> : vector<8x1xf32>
    %53 = tpu.matmul %50, %52, %cst_21 {dimension_numbers = #tpu.dot_dimension_numbers<[1], [0], [0], [1], [0, 0, 1, 1], [], []>} : vector<8x8xf32>, vector<8x1xf32>, vector<8x1xf32> -> vector<8x1xf32>
    %cst_22 = arith.constant dense<0.000000e+00> : vector<1xf32>
    %54 = vector.multi_reduction <add>, %43, %cst_22 [0] : vector<8x1xf32> to vector<1xf32>
    %55 = vector.shape_cast %54 : vector<1xf32> to vector<1x1xf32>
    %cst_23 = arith.constant 5.000000e-01 : f32
    %56 = vector.broadcast %cst_23 : f32 to vector<1x1xf32>
    %57 = arith.mulf %55, %56 : vector<1x1xf32>
    %58 = math.floor %57 : vector<1x1xf32>
    %59 = vector.broadcast %cst_7 : f32 to vector<1x1xf32>
    %60 = arith.subf %59, %55 : vector<1x1xf32>
    %cst_24 = arith.constant 5.000000e-01 : f32
    %61 = vector.broadcast %cst_24 : f32 to vector<1x1xf32>
    %62 = arith.mulf %60, %61 : vector<1x1xf32>
    %63 = math.floor %62 : vector<1x1xf32>
    %cst_25 = arith.constant 5.000000e-01 : f32
    %64 = vector.broadcast %cst_25 : f32 to vector<1x1xf32>
    %65 = arith.subf %58, %64 : vector<1x1xf32>
    %66 = vector.broadcast %65 : vector<1x1xf32> to vector<8x1xf32>
    %67 = arith.cmpf oge, %51, %66 : vector<8x1xf32>
    %68 = arith.andi %41, %67 : vector<8x1xi1>
    %cst_26 = arith.constant dense<true> : vector<8x1xi1>
    %69 = arith.xori %41, %cst_26 : vector<8x1xi1>
    %cst_27 = arith.constant 5.000000e-01 : f32
    %70 = vector.broadcast %cst_27 : f32 to vector<1x1xf32>
    %71 = arith.subf %63, %70 : vector<1x1xf32>
    %72 = vector.broadcast %71 : vector<1x1xf32> to vector<8x1xf32>
    %73 = arith.cmpf oge, %53, %72 : vector<8x1xf32>
    %74 = arith.andi %69, %73 : vector<8x1xi1>
    %75 = vector.broadcast %cst_8 : f32 to vector<8x1xf32>
    %76 = arith.select %68, %37, %75 : vector<8x1xi1>, vector<8x1xf32>
    %cst_28 = arith.constant dense<0xFF800000> : vector<1xf32>
    %77 = vector.multi_reduction <maximumf>, %76, %cst_28 [0] : vector<8x1xf32> to vector<1xf32>
    %78 = vector.shape_cast %77 : vector<1xf32> to vector<1x1xf32>
    %79 = vector.broadcast %cst_8 : f32 to vector<8x1xf32>
    %80 = arith.select %74, %37, %79 : vector<8x1xi1>, vector<8x1xf32>
    %cst_29 = arith.constant dense<0xFF800000> : vector<1xf32>
    %81 = vector.multi_reduction <maximumf>, %80, %cst_29 [0] : vector<8x1xf32> to vector<1xf32>
    %82 = vector.shape_cast %81 : vector<1xf32> to vector<1x1xf32>
    %83 = arith.mulf %37, %37 : vector<8x1xf32>
    %cst_30 = arith.constant dense<0.000000e+00> : vector<1xf32>
    %84 = vector.multi_reduction <add>, %83, %cst_30 [0] : vector<8x1xf32> to vector<1xf32>
    %85 = vector.shape_cast %84 : vector<1xf32> to vector<1x1xf32>
    %86 = math.sqrt %85 : vector<1x1xf32>
    %cst_31 = arith.constant 9.99999974E-6 : f32
    %87 = vector.broadcast %cst_31 : f32 to vector<1x1xf32>
    %88 = arith.cmpf ogt, %86, %87 : vector<1x1xf32>
    %cst_32 = arith.constant 9.99999974E-6 : f32
    %89 = vector.broadcast %cst_32 : f32 to vector<1x1xf32>
    %90 = arith.divf %89, %86 : vector<1x1xf32>
    %cst_33 = arith.constant 1.000000e+00 : f32
    %91 = vector.broadcast %cst_33 : f32 to vector<1x1xf32>
    %92 = arith.select %88, %90, %91 : vector<1x1xi1>, vector<1x1xf32>
    %cst_34 = arith.constant 1.000000e+05 : f32
    %93 = vector.broadcast %cst_34 : f32 to vector<1x1xf32>
    %94 = arith.mulf %92, %93 : vector<1x1xf32>
    %95 = arith.subf %82, %78 : vector<1x1xf32>
    %96 = math.absf %95 : vector<1x1xf32>
    %97 = arith.mulf %94, %96 : vector<1x1xf32>
    %c8_i32 = arith.constant 8 : i32
    %98 = arith.cmpi slt, %13, %c8_i32 : i32
    %cst_35 = arith.constant 0.000000e+00 : f32
    %99 = vector.broadcast %cst_35 : f32 to vector<1x1xf32>
    %100 = arith.select %98, %97, %99 : vector<1x1xf32>
    %101 = arith.addf %11, %100 : vector<1x1xf32>
    %c1_i32 = arith.constant 1 : i32
    %c4_i32_36 = arith.constant 4 : i32
    %102 = arith.muli %arg0, %c4_i32_36 : i32
    %103 = arith.addi %102, %c1_i32 : i32
    %c7_i32_37 = arith.constant 7 : i32
    %104 = arith.minsi %103, %c7_i32_37 : i32
    %105 = arith.index_cast %104 : i32 to index
    %c0_38 = arith.constant 0 : index
    %106 = vector.load %arg1[%105, %c0_38] : memref<8x32xf32, #tpu.memory_space<vmem>>, vector<1x32xf32>
    %107 = arith.mulf %106, %106 : vector<1x32xf32>
    %cst_39 = arith.constant dense<0.000000e+00> : vector<1xf32>
    %108 = vector.multi_reduction <add>, %107, %cst_39 [1] : vector<1x32xf32> to vector<1xf32>
    %109 = vector.shape_cast %108 : vector<1xf32> to vector<1x1xf32>
    %cst_40 = arith.constant dense<0.000000e+00> : vector<1x8xf32>
    %110 = tpu.matmul %106, %0, %cst_40 {dimension_numbers = #tpu.dot_dimension_numbers<[1], [1], [0], [0], [0, 0, 1, 0], [], []>} : vector<1x32xf32>, vector<8x32xf32>, vector<1x8xf32> -> vector<1x8xf32>
    %cst_41 = arith.constant dense<0.000000e+00> : vector<8x1xf32>
    %111 = tpu.matmul %0, %106, %cst_41 {dimension_numbers = #tpu.dot_dimension_numbers<[1], [1], [0], [0], [0, 0, 1, 0], [], []>} : vector<8x32xf32>, vector<1x32xf32>, vector<8x1xf32> -> vector<8x1xf32>
    %112 = vector.broadcast %109 : vector<1x1xf32> to vector<1x8xf32>
    %113 = arith.addf %6, %112 : vector<1x8xf32>
    %cst_42 = arith.constant 2.000000e+00 : f32
    %114 = vector.broadcast %cst_42 : f32 to vector<1x8xf32>
    %115 = arith.mulf %114, %110 : vector<1x8xf32>
    %116 = arith.subf %113, %115 : vector<1x8xf32>
    %cst_43 = arith.constant 9.99999996E-13 : f32
    %117 = vector.broadcast %cst_43 : f32 to vector<1x8xf32>
    %118 = arith.maximumf %116, %117 : vector<1x8xf32>
    %119 = math.sqrt %118 : vector<1x8xf32>
    %120 = vector.broadcast %109 : vector<1x1xf32> to vector<8x1xf32>
    %121 = arith.addf %4, %120 : vector<8x1xf32>
    %cst_44 = arith.constant 2.000000e+00 : f32
    %122 = vector.broadcast %cst_44 : f32 to vector<8x1xf32>
    %123 = arith.mulf %122, %111 : vector<8x1xf32>
    %124 = arith.subf %121, %123 : vector<8x1xf32>
    %cst_45 = arith.constant 9.99999996E-13 : f32
    %125 = vector.broadcast %cst_45 : f32 to vector<8x1xf32>
    %126 = arith.maximumf %124, %125 : vector<8x1xf32>
    %127 = math.sqrt %126 : vector<8x1xf32>
    %128 = arith.index_cast %104 : i32 to index
    %c0_46 = arith.constant 0 : index
    %129 = vector.load %arg2[%128, %c0_46] : memref<8x1xi32, #tpu.memory_space<vmem>>, vector<1x1xi32>
    %130 = vector.broadcast %129 : vector<1x1xi32> to vector<8x1xi32>
    %131 = arith.cmpi eq, %1, %130 : vector<8x1xi32>
    %132 = arith.extui %131 : vector<8x1xi1> to vector<8x1xi32>
    %133 = arith.sitofp %132 : vector<8x1xi32> to vector<8x1xf32>
    %134 = vector.broadcast %119 : vector<1x8xf32> to vector<8x8xf32>
    %135 = vector.broadcast %127 : vector<8x1xf32> to vector<8x8xf32>
    %136 = arith.cmpf oge, %134, %135 : vector<8x8xf32>
    %137 = arith.ori %10, %136 : vector<8x8xi1>
    %cst_47 = arith.constant 1.000000e+00 : f32
    %cst_48 = arith.constant 0.000000e+00 : f32
    %138 = vector.broadcast %cst_47 : f32 to vector<8x8xf32>
    %139 = vector.broadcast %cst_48 : f32 to vector<8x8xf32>
    %140 = arith.select %137, %138, %139 : vector<8x8xi1>, vector<8x8xf32>
    %cst_49 = arith.constant dense<0.000000e+00> : vector<8x1xf32>
    %141 = tpu.matmul %140, %133, %cst_49 {dimension_numbers = #tpu.dot_dimension_numbers<[1], [0], [0], [1], [0, 0, 1, 1], [], []>} : vector<8x8xf32>, vector<8x1xf32>, vector<8x1xf32> -> vector<8x1xf32>
    %142 = arith.subf %7, %133 : vector<8x1xf32>
    %cst_50 = arith.constant dense<0.000000e+00> : vector<8x1xf32>
    %143 = tpu.matmul %140, %142, %cst_50 {dimension_numbers = #tpu.dot_dimension_numbers<[1], [0], [0], [1], [0, 0, 1, 1], [], []>} : vector<8x8xf32>, vector<8x1xf32>, vector<8x1xf32> -> vector<8x1xf32>
    %cst_51 = arith.constant dense<0.000000e+00> : vector<1xf32>
    %144 = vector.multi_reduction <add>, %133, %cst_51 [0] : vector<8x1xf32> to vector<1xf32>
    %145 = vector.shape_cast %144 : vector<1xf32> to vector<1x1xf32>
    %cst_52 = arith.constant 5.000000e-01 : f32
    %146 = vector.broadcast %cst_52 : f32 to vector<1x1xf32>
    %147 = arith.mulf %145, %146 : vector<1x1xf32>
    %148 = math.floor %147 : vector<1x1xf32>
    %149 = vector.broadcast %cst_7 : f32 to vector<1x1xf32>
    %150 = arith.subf %149, %145 : vector<1x1xf32>
    %cst_53 = arith.constant 5.000000e-01 : f32
    %151 = vector.broadcast %cst_53 : f32 to vector<1x1xf32>
    %152 = arith.mulf %150, %151 : vector<1x1xf32>
    %153 = math.floor %152 : vector<1x1xf32>
    %cst_54 = arith.constant 5.000000e-01 : f32
    %154 = vector.broadcast %cst_54 : f32 to vector<1x1xf32>
    %155 = arith.subf %148, %154 : vector<1x1xf32>
    %156 = vector.broadcast %155 : vector<1x1xf32> to vector<8x1xf32>
    %157 = arith.cmpf oge, %141, %156 : vector<8x1xf32>
    %158 = arith.andi %131, %157 : vector<8x1xi1>
    %cst_55 = arith.constant dense<true> : vector<8x1xi1>
    %159 = arith.xori %131, %cst_55 : vector<8x1xi1>
    %cst_56 = arith.constant 5.000000e-01 : f32
    %160 = vector.broadcast %cst_56 : f32 to vector<1x1xf32>
    %161 = arith.subf %153, %160 : vector<1x1xf32>
    %162 = vector.broadcast %161 : vector<1x1xf32> to vector<8x1xf32>
    %163 = arith.cmpf oge, %143, %162 : vector<8x1xf32>
    %164 = arith.andi %159, %163 : vector<8x1xi1>
    %165 = vector.broadcast %cst_8 : f32 to vector<8x1xf32>
    %166 = arith.select %158, %127, %165 : vector<8x1xi1>, vector<8x1xf32>
    %cst_57 = arith.constant dense<0xFF800000> : vector<1xf32>
    %167 = vector.multi_reduction <maximumf>, %166, %cst_57 [0] : vector<8x1xf32> to vector<1xf32>
    %168 = vector.shape_cast %167 : vector<1xf32> to vector<1x1xf32>
    %169 = vector.broadcast %cst_8 : f32 to vector<8x1xf32>
    %170 = arith.select %164, %127, %169 : vector<8x1xi1>, vector<8x1xf32>
    %cst_58 = arith.constant dense<0xFF800000> : vector<1xf32>
    %171 = vector.multi_reduction <maximumf>, %170, %cst_58 [0] : vector<8x1xf32> to vector<1xf32>
    %172 = vector.shape_cast %171 : vector<1xf32> to vector<1x1xf32>
    %173 = arith.mulf %127, %127 : vector<8x1xf32>
    %cst_59 = arith.constant dense<0.000000e+00> : vector<1xf32>
    %174 = vector.multi_reduction <add>, %173, %cst_59 [0] : vector<8x1xf32> to vector<1xf32>
    %175 = vector.shape_cast %174 : vector<1xf32> to vector<1x1xf32>
    %176 = math.sqrt %175 : vector<1x1xf32>
    %cst_60 = arith.constant 9.99999974E-6 : f32
    %177 = vector.broadcast %cst_60 : f32 to vector<1x1xf32>
    %178 = arith.cmpf ogt, %176, %177 : vector<1x1xf32>
    %cst_61 = arith.constant 9.99999974E-6 : f32
    %179 = vector.broadcast %cst_61 : f32 to vector<1x1xf32>
    %180 = arith.divf %179, %176 : vector<1x1xf32>
    %cst_62 = arith.constant 1.000000e+00 : f32
    %181 = vector.broadcast %cst_62 : f32 to vector<1x1xf32>
    %182 = arith.select %178, %180, %181 : vector<1x1xi1>, vector<1x1xf32>
    %cst_63 = arith.constant 1.000000e+05 : f32
    %183 = vector.broadcast %cst_63 : f32 to vector<1x1xf32>
    %184 = arith.mulf %182, %183 : vector<1x1xf32>
    %185 = arith.subf %172, %168 : vector<1x1xf32>
    %186 = math.absf %185 : vector<1x1xf32>
    %187 = arith.mulf %184, %186 : vector<1x1xf32>
    %c8_i32_64 = arith.constant 8 : i32
    %188 = arith.cmpi slt, %103, %c8_i32_64 : i32
    %cst_65 = arith.constant 0.000000e+00 : f32
    %189 = vector.broadcast %cst_65 : f32 to vector<1x1xf32>
    %190 = arith.select %188, %187, %189 : vector<1x1xf32>
    %191 = arith.addf %101, %190 : vector<1x1xf32>
    %c2_i32 = arith.constant 2 : i32
    %c4_i32_66 = arith.constant 4 : i32
    %192 = arith.muli %arg0, %c4_i32_66 : i32
    %193 = arith.addi %192, %c2_i32 : i32
    %c7_i32_67 = arith.constant 7 : i32
    %194 = arith.minsi %193, %c7_i32_67 : i32
    %195 = arith.index_cast %194 : i32 to index
    %c0_68 = arith.constant 0 : index
    %196 = vector.load %arg1[%195, %c0_68] : memref<8x32xf32, #tpu.memory_space<vmem>>, vector<1x32xf32>
    %197 = arith.mulf %196, %196 : vector<1x32xf32>
    %cst_69 = arith.constant dense<0.000000e+00> : vector<1xf32>
    %198 = vector.multi_reduction <add>, %197, %cst_69 [1] : vector<1x32xf32> to vector<1xf32>
    %199 = vector.shape_cast %198 : vector<1xf32> to vector<1x1xf32>
    %cst_70 = arith.constant dense<0.000000e+00> : vector<1x8xf32>
    %200 = tpu.matmul %196, %0, %cst_70 {dimension_numbers = #tpu.dot_dimension_numbers<[1], [1], [0], [0], [0, 0, 1, 0], [], []>} : vector<1x32xf32>, vector<8x32xf32>, vector<1x8xf32> -> vector<1x8xf32>
    %cst_71 = arith.constant dense<0.000000e+00> : vector<8x1xf32>
    %201 = tpu.matmul %0, %196, %cst_71 {dimension_numbers = #tpu.dot_dimension_numbers<[1], [1], [0], [0], [0, 0, 1, 0], [], []>} : vector<8x32xf32>, vector<1x32xf32>, vector<8x1xf32> -> vector<8x1xf32>
    %202 = vector.broadcast %199 : vector<1x1xf32> to vector<1x8xf32>
    %203 = arith.addf %6, %202 : vector<1x8xf32>
    %cst_72 = arith.constant 2.000000e+00 : f32
    %204 = vector.broadcast %cst_72 : f32 to vector<1x8xf32>
    %205 = arith.mulf %204, %200 : vector<1x8xf32>
    %206 = arith.subf %203, %205 : vector<1x8xf32>
    %cst_73 = arith.constant 9.99999996E-13 : f32
    %207 = vector.broadcast %cst_73 : f32 to vector<1x8xf32>
    %208 = arith.maximumf %206, %207 : vector<1x8xf32>
    %209 = math.sqrt %208 : vector<1x8xf32>
    %210 = vector.broadcast %199 : vector<1x1xf32> to vector<8x1xf32>
    %211 = arith.addf %4, %210 : vector<8x1xf32>
    %cst_74 = arith.constant 2.000000e+00 : f32
    %212 = vector.broadcast %cst_74 : f32 to vector<8x1xf32>
    %213 = arith.mulf %212, %201 : vector<8x1xf32>
    %214 = arith.subf %211, %213 : vector<8x1xf32>
    %cst_75 = arith.constant 9.99999996E-13 : f32
    %215 = vector.broadcast %cst_75 : f32 to vector<8x1xf32>
    %216 = arith.maximumf %214, %215 : vector<8x1xf32>
    %217 = math.sqrt %216 : vector<8x1xf32>
    %218 = arith.index_cast %194 : i32 to index
    %c0_76 = arith.constant 0 : index
    %219 = vector.load %arg2[%218, %c0_76] : memref<8x1xi32, #tpu.memory_space<vmem>>, vector<1x1xi32>
    %220 = vector.broadcast %219 : vector<1x1xi32> to vector<8x1xi32>
    %221 = arith.cmpi eq, %1, %220 : vector<8x1xi32>
    %222 = arith.extui %221 : vector<8x1xi1> to vector<8x1xi32>
    %223 = arith.sitofp %222 : vector<8x1xi32> to vector<8x1xf32>
    %224 = vector.broadcast %209 : vector<1x8xf32> to vector<8x8xf32>
    %225 = vector.broadcast %217 : vector<8x1xf32> to vector<8x8xf32>
    %226 = arith.cmpf oge, %224, %225 : vector<8x8xf32>
    %227 = arith.ori %10, %226 : vector<8x8xi1>
    %cst_77 = arith.constant 1.000000e+00 : f32
    %cst_78 = arith.constant 0.000000e+00 : f32
    %228 = vector.broadcast %cst_77 : f32 to vector<8x8xf32>
    %229 = vector.broadcast %cst_78 : f32 to vector<8x8xf32>
    %230 = arith.select %227, %228, %229 : vector<8x8xi1>, vector<8x8xf32>
    %cst_79 = arith.constant dense<0.000000e+00> : vector<8x1xf32>
    %231 = tpu.matmul %230, %223, %cst_79 {dimension_numbers = #tpu.dot_dimension_numbers<[1], [0], [0], [1], [0, 0, 1, 1], [], []>} : vector<8x8xf32>, vector<8x1xf32>, vector<8x1xf32> -> vector<8x1xf32>
    %232 = arith.subf %7, %223 : vector<8x1xf32>
    %cst_80 = arith.constant dense<0.000000e+00> : vector<8x1xf32>
    %233 = tpu.matmul %230, %232, %cst_80 {dimension_numbers = #tpu.dot_dimension_numbers<[1], [0], [0], [1], [0, 0, 1, 1], [], []>} : vector<8x8xf32>, vector<8x1xf32>, vector<8x1xf32> -> vector<8x1xf32>
    %cst_81 = arith.constant dense<0.000000e+00> : vector<1xf32>
    %234 = vector.multi_reduction <add>, %223, %cst_81 [0] : vector<8x1xf32> to vector<1xf32>
    %235 = vector.shape_cast %234 : vector<1xf32> to vector<1x1xf32>
    %cst_82 = arith.constant 5.000000e-01 : f32
    %236 = vector.broadcast %cst_82 : f32 to vector<1x1xf32>
    %237 = arith.mulf %235, %236 : vector<1x1xf32>
    %238 = math.floor %237 : vector<1x1xf32>
    %239 = vector.broadcast %cst_7 : f32 to vector<1x1xf32>
    %240 = arith.subf %239, %235 : vector<1x1xf32>
    %cst_83 = arith.constant 5.000000e-01 : f32
    %241 = vector.broadcast %cst_83 : f32 to vector<1x1xf32>
    %242 = arith.mulf %240, %241 : vector<1x1xf32>
    %243 = math.floor %242 : vector<1x1xf32>
    %cst_84 = arith.constant 5.000000e-01 : f32
    %244 = vector.broadcast %cst_84 : f32 to vector<1x1xf32>
    %245 = arith.subf %238, %244 : vector<1x1xf32>
    %246 = vector.broadcast %245 : vector<1x1xf32> to vector<8x1xf32>
    %247 = arith.cmpf oge, %231, %246 : vector<8x1xf32>
    %248 = arith.andi %221, %247 : vector<8x1xi1>
    %cst_85 = arith.constant dense<true> : vector<8x1xi1>
    %249 = arith.xori %221, %cst_85 : vector<8x1xi1>
    %cst_86 = arith.constant 5.000000e-01 : f32
    %250 = vector.broadcast %cst_86 : f32 to vector<1x1xf32>
    %251 = arith.subf %243, %250 : vector<1x1xf32>
    %252 = vector.broadcast %251 : vector<1x1xf32> to vector<8x1xf32>
    %253 = arith.cmpf oge, %233, %252 : vector<8x1xf32>
    %254 = arith.andi %249, %253 : vector<8x1xi1>
    %255 = vector.broadcast %cst_8 : f32 to vector<8x1xf32>
    %256 = arith.select %248, %217, %255 : vector<8x1xi1>, vector<8x1xf32>
    %cst_87 = arith.constant dense<0xFF800000> : vector<1xf32>
    %257 = vector.multi_reduction <maximumf>, %256, %cst_87 [0] : vector<8x1xf32> to vector<1xf32>
    %258 = vector.shape_cast %257 : vector<1xf32> to vector<1x1xf32>
    %259 = vector.broadcast %cst_8 : f32 to vector<8x1xf32>
    %260 = arith.select %254, %217, %259 : vector<8x1xi1>, vector<8x1xf32>
    %cst_88 = arith.constant dense<0xFF800000> : vector<1xf32>
    %261 = vector.multi_reduction <maximumf>, %260, %cst_88 [0] : vector<8x1xf32> to vector<1xf32>
    %262 = vector.shape_cast %261 : vector<1xf32> to vector<1x1xf32>
    %263 = arith.mulf %217, %217 : vector<8x1xf32>
    %cst_89 = arith.constant dense<0.000000e+00> : vector<1xf32>
    %264 = vector.multi_reduction <add>, %263, %cst_89 [0] : vector<8x1xf32> to vector<1xf32>
    %265 = vector.shape_cast %264 : vector<1xf32> to vector<1x1xf32>
    %266 = math.sqrt %265 : vector<1x1xf32>
    %cst_90 = arith.constant 9.99999974E-6 : f32
    %267 = vector.broadcast %cst_90 : f32 to vector<1x1xf32>
    %268 = arith.cmpf ogt, %266, %267 : vector<1x1xf32>
    %cst_91 = arith.constant 9.99999974E-6 : f32
    %269 = vector.broadcast %cst_91 : f32 to vector<1x1xf32>
    %270 = arith.divf %269, %266 : vector<1x1xf32>
    %cst_92 = arith.constant 1.000000e+00 : f32
    %271 = vector.broadcast %cst_92 : f32 to vector<1x1xf32>
    %272 = arith.select %268, %270, %271 : vector<1x1xi1>, vector<1x1xf32>
    %cst_93 = arith.constant 1.000000e+05 : f32
    %273 = vector.broadcast %cst_93 : f32 to vector<1x1xf32>
    %274 = arith.mulf %272, %273 : vector<1x1xf32>
    %275 = arith.subf %262, %258 : vector<1x1xf32>
    %276 = math.absf %275 : vector<1x1xf32>
    %277 = arith.mulf %274, %276 : vector<1x1xf32>
    %c8_i32_94 = arith.constant 8 : i32
    %278 = arith.cmpi slt, %193, %c8_i32_94 : i32
    %cst_95 = arith.constant 0.000000e+00 : f32
    %279 = vector.broadcast %cst_95 : f32 to vector<1x1xf32>
    %280 = arith.select %278, %277, %279 : vector<1x1xf32>
    %281 = arith.addf %191, %280 : vector<1x1xf32>
    %c3_i32 = arith.constant 3 : i32
    %c4_i32_96 = arith.constant 4 : i32
    %282 = arith.muli %arg0, %c4_i32_96 : i32
    %283 = arith.addi %282, %c3_i32 : i32
    %c7_i32_97 = arith.constant 7 : i32
    %284 = arith.minsi %283, %c7_i32_97 : i32
    %285 = arith.index_cast %284 : i32 to index
    %c0_98 = arith.constant 0 : index
    %286 = vector.load %arg1[%285, %c0_98] : memref<8x32xf32, #tpu.memory_space<vmem>>, vector<1x32xf32>
    %287 = arith.mulf %286, %286 : vector<1x32xf32>
    %cst_99 = arith.constant dense<0.000000e+00> : vector<1xf32>
    %288 = vector.multi_reduction <add>, %287, %cst_99 [1] : vector<1x32xf32> to vector<1xf32>
    %289 = vector.shape_cast %288 : vector<1xf32> to vector<1x1xf32>
    %cst_100 = arith.constant dense<0.000000e+00> : vector<1x8xf32>
    %290 = tpu.matmul %286, %0, %cst_100 {dimension_numbers = #tpu.dot_dimension_numbers<[1], [1], [0], [0], [0, 0, 1, 0], [], []>} : vector<1x32xf32>, vector<8x32xf32>, vector<1x8xf32> -> vector<1x8xf32>
    %cst_101 = arith.constant dense<0.000000e+00> : vector<8x1xf32>
    %291 = tpu.matmul %0, %286, %cst_101 {dimension_numbers = #tpu.dot_dimension_numbers<[1], [1], [0], [0], [0, 0, 1, 0], [], []>} : vector<8x32xf32>, vector<1x32xf32>, vector<8x1xf32> -> vector<8x1xf32>
    %292 = vector.broadcast %289 : vector<1x1xf32> to vector<1x8xf32>
    %293 = arith.addf %6, %292 : vector<1x8xf32>
    %cst_102 = arith.constant 2.000000e+00 : f32
    %294 = vector.broadcast %cst_102 : f32 to vector<1x8xf32>
    %295 = arith.mulf %294, %290 : vector<1x8xf32>
    %296 = arith.subf %293, %295 : vector<1x8xf32>
    %cst_103 = arith.constant 9.99999996E-13 : f32
    %297 = vector.broadcast %cst_103 : f32 to vector<1x8xf32>
    %298 = arith.maximumf %296, %297 : vector<1x8xf32>
    %299 = math.sqrt %298 : vector<1x8xf32>
    %300 = vector.broadcast %289 : vector<1x1xf32> to vector<8x1xf32>
    %301 = arith.addf %4, %300 : vector<8x1xf32>
    %cst_104 = arith.constant 2.000000e+00 : f32
    %302 = vector.broadcast %cst_104 : f32 to vector<8x1xf32>
    %303 = arith.mulf %302, %291 : vector<8x1xf32>
    %304 = arith.subf %301, %303 : vector<8x1xf32>
    %cst_105 = arith.constant 9.99999996E-13 : f32
    %305 = vector.broadcast %cst_105 : f32 to vector<8x1xf32>
    %306 = arith.maximumf %304, %305 : vector<8x1xf32>
    %307 = math.sqrt %306 : vector<8x1xf32>
    %308 = arith.index_cast %284 : i32 to index
    %c0_106 = arith.constant 0 : index
    %309 = vector.load %arg2[%308, %c0_106] : memref<8x1xi32, #tpu.memory_space<vmem>>, vector<1x1xi32>
    %310 = vector.broadcast %309 : vector<1x1xi32> to vector<8x1xi32>
    %311 = arith.cmpi eq, %1, %310 : vector<8x1xi32>
    %312 = arith.extui %311 : vector<8x1xi1> to vector<8x1xi32>
    %313 = arith.sitofp %312 : vector<8x1xi32> to vector<8x1xf32>
    %314 = vector.broadcast %299 : vector<1x8xf32> to vector<8x8xf32>
    %315 = vector.broadcast %307 : vector<8x1xf32> to vector<8x8xf32>
    %316 = arith.cmpf oge, %314, %315 : vector<8x8xf32>
    %317 = arith.ori %10, %316 : vector<8x8xi1>
    %cst_107 = arith.constant 1.000000e+00 : f32
    %cst_108 = arith.constant 0.000000e+00 : f32
    %318 = vector.broadcast %cst_107 : f32 to vector<8x8xf32>
    %319 = vector.broadcast %cst_108 : f32 to vector<8x8xf32>
    %320 = arith.select %317, %318, %319 : vector<8x8xi1>, vector<8x8xf32>
    %cst_109 = arith.constant dense<0.000000e+00> : vector<8x1xf32>
    %321 = tpu.matmul %320, %313, %cst_109 {dimension_numbers = #tpu.dot_dimension_numbers<[1], [0], [0], [1], [0, 0, 1, 1], [], []>} : vector<8x8xf32>, vector<8x1xf32>, vector<8x1xf32> -> vector<8x1xf32>
    %322 = arith.subf %7, %313 : vector<8x1xf32>
    %cst_110 = arith.constant dense<0.000000e+00> : vector<8x1xf32>
    %323 = tpu.matmul %320, %322, %cst_110 {dimension_numbers = #tpu.dot_dimension_numbers<[1], [0], [0], [1], [0, 0, 1, 1], [], []>} : vector<8x8xf32>, vector<8x1xf32>, vector<8x1xf32> -> vector<8x1xf32>
    %cst_111 = arith.constant dense<0.000000e+00> : vector<1xf32>
    %324 = vector.multi_reduction <add>, %313, %cst_111 [0] : vector<8x1xf32> to vector<1xf32>
    %325 = vector.shape_cast %324 : vector<1xf32> to vector<1x1xf32>
    %cst_112 = arith.constant 5.000000e-01 : f32
    %326 = vector.broadcast %cst_112 : f32 to vector<1x1xf32>
    %327 = arith.mulf %325, %326 : vector<1x1xf32>
    %328 = math.floor %327 : vector<1x1xf32>
    %329 = vector.broadcast %cst_7 : f32 to vector<1x1xf32>
    %330 = arith.subf %329, %325 : vector<1x1xf32>
    %cst_113 = arith.constant 5.000000e-01 : f32
    %331 = vector.broadcast %cst_113 : f32 to vector<1x1xf32>
    %332 = arith.mulf %330, %331 : vector<1x1xf32>
    %333 = math.floor %332 : vector<1x1xf32>
    %cst_114 = arith.constant 5.000000e-01 : f32
    %334 = vector.broadcast %cst_114 : f32 to vector<1x1xf32>
    %335 = arith.subf %328, %334 : vector<1x1xf32>
    %336 = vector.broadcast %335 : vector<1x1xf32> to vector<8x1xf32>
    %337 = arith.cmpf oge, %321, %336 : vector<8x1xf32>
    %338 = arith.andi %311, %337 : vector<8x1xi1>
    %cst_115 = arith.constant dense<true> : vector<8x1xi1>
    %339 = arith.xori %311, %cst_115 : vector<8x1xi1>
    %cst_116 = arith.constant 5.000000e-01 : f32
    %340 = vector.broadcast %cst_116 : f32 to vector<1x1xf32>
    %341 = arith.subf %333, %340 : vector<1x1xf32>
    %342 = vector.broadcast %341 : vector<1x1xf32> to vector<8x1xf32>
    %343 = arith.cmpf oge, %323, %342 : vector<8x1xf32>
    %344 = arith.andi %339, %343 : vector<8x1xi1>
    %345 = vector.broadcast %cst_8 : f32 to vector<8x1xf32>
    %346 = arith.select %338, %307, %345 : vector<8x1xi1>, vector<8x1xf32>
    %cst_117 = arith.constant dense<0xFF800000> : vector<1xf32>
    %347 = vector.multi_reduction <maximumf>, %346, %cst_117 [0] : vector<8x1xf32> to vector<1xf32>
    %348 = vector.shape_cast %347 : vector<1xf32> to vector<1x1xf32>
    %349 = vector.broadcast %cst_8 : f32 to vector<8x1xf32>
    %350 = arith.select %344, %307, %349 : vector<8x1xi1>, vector<8x1xf32>
    %cst_118 = arith.constant dense<0xFF800000> : vector<1xf32>
    %351 = vector.multi_reduction <maximumf>, %350, %cst_118 [0] : vector<8x1xf32> to vector<1xf32>
    %352 = vector.shape_cast %351 : vector<1xf32> to vector<1x1xf32>
    %353 = arith.mulf %307, %307 : vector<8x1xf32>
    %cst_119 = arith.constant dense<0.000000e+00> : vector<1xf32>
    %354 = vector.multi_reduction <add>, %353, %cst_119 [0] : vector<8x1xf32> to vector<1xf32>
    %355 = vector.shape_cast %354 : vector<1xf32> to vector<1x1xf32>
    %356 = math.sqrt %355 : vector<1x1xf32>
    %cst_120 = arith.constant 9.99999974E-6 : f32
    %357 = vector.broadcast %cst_120 : f32 to vector<1x1xf32>
    %358 = arith.cmpf ogt, %356, %357 : vector<1x1xf32>
    %cst_121 = arith.constant 9.99999974E-6 : f32
    %359 = vector.broadcast %cst_121 : f32 to vector<1x1xf32>
    %360 = arith.divf %359, %356 : vector<1x1xf32>
    %cst_122 = arith.constant 1.000000e+00 : f32
    %361 = vector.broadcast %cst_122 : f32 to vector<1x1xf32>
    %362 = arith.select %358, %360, %361 : vector<1x1xi1>, vector<1x1xf32>
    %cst_123 = arith.constant 1.000000e+05 : f32
    %363 = vector.broadcast %cst_123 : f32 to vector<1x1xf32>
    %364 = arith.mulf %362, %363 : vector<1x1xf32>
    %365 = arith.subf %352, %348 : vector<1x1xf32>
    %366 = math.absf %365 : vector<1x1xf32>
    %367 = arith.mulf %364, %366 : vector<1x1xf32>
    %c8_i32_124 = arith.constant 8 : i32
    %368 = arith.cmpi slt, %283, %c8_i32_124 : i32
    %cst_125 = arith.constant 0.000000e+00 : f32
    %369 = vector.broadcast %cst_125 : f32 to vector<1x1xf32>
    %370 = arith.select %368, %367, %369 : vector<1x1xf32>
    %371 = arith.addf %281, %370 : vector<1x1xf32>
    %c4_i32_126 = arith.constant 4 : i32
    %372 = vector.shape_cast %371 : vector<1x1xf32> to vector<1x1x1xf32>
    %c0_127 = arith.constant 0 : index
    %c0_128 = arith.constant 0 : index
    %c0_129 = arith.constant 0 : index
    %373 = vector.load %arg3[%c0_127, %c0_128, %c0_129] : memref<1x1x1xf32, #tpu.memory_space<vmem>>, vector<1x1x1xf32>
    tpu.vector_store %arg3[%c0_127, %c0_128, %c0_129], %372 {strides = array<i32>} : memref<1x1x1xf32, #tpu.memory_space<vmem>>, vector<1x1x1xf32>,
    return
  }
  func.func @transform_0(%arg0: i32) -> (i32, i32) {
    %c0_i32 = arith.constant 0 : i32
    %c0_i32_0 = arith.constant 0 : i32
    %c0_i32_1 = arith.constant 0 : i32
    return %c0_i32, %c0_i32_0 : i32, i32
  }
  func.func @transform_1(%arg0: i32) -> (i32, i32) {
    %c0_i32 = arith.constant 0 : i32
    %c0_i32_0 = arith.constant 0 : i32
    %c0_i32_1 = arith.constant 0 : i32
    return %c0_i32, %c0_i32_0 : i32, i32
  }
  func.func @transform_2(%arg0: i32) -> (i32, i32, i32) {
    %c0_i32 = arith.constant 0 : i32
    %c0_i32_0 = arith.constant 0 : i32
    %c0_i32_1 = arith.constant 0 : i32
    return %arg0, %c0_i32, %c0_i32_0 : i32, i32, i32
  }
}

</mosaic_0001>

<llo_original>
// kernel: tpu_custom_call.1
$region0: #{tpu_custom_call.1}
  #allocation0 [shape = 'u32[]', space=smem, size = 0x4, offset = 0x4, fixed_abs, tag = 'smem constant byte address 0x4 - core index']
  #allocation1 [shape = 'u32[144,128]{1,0:T(1,128)}', space=vmem, size = 0x12000, scoped, tag = 'internal scratch']
  %s0 = inlined_call_operand.vmem [shape: f32[8,32], index: 0, kind: input, shape index: {}]
  %s1 = inlined_call_operand.vmem [shape: s32[8,1], index: 1, kind: input, shape index: {}]
  %s2 = inlined_call_operand.vmem [shape: f32[2,1,1], index: 2, kind: output, shape index: {}]
  %s3 = sld [smem:[#allocation0]]
  $region41: #{tpu_custom_call.1} parent=0
    _
  %s5 = ssub.s32 1, %s3
  %s6 = scalar_select 0, %s5, %s3
  loop: start=0, step=1, limit=4
  $region2: #{tpu_custom_call.1} parent=0 // loop_pre_header
    _
  $region3: #{tpu_custom_call.1} parent=0 // loop_header
    %s8 = sphi 0, %s12
    %p9 = scmp.ge.s32.totalorder %s8, 4
    %s16 = sphi 0, %s16
    %s18 = sphi 0, %s16
    %s19 = sphi 0, %s18
    %s33 = sphi 0, %s19
    %s37 = sphi 0, %s37
    %s39 = sphi 0, %s37
    %s40 = sphi 0, %s39
    %s54 = sphi 0, %s40
    %s60 = sphi 0, %s62
    %s63 = sphi 0, %s60
    %s64 = sphi 0, %s63
    %s80 = sphi 0, %s64
  $region4: #{tpu_custom_call.1} parent=0 // loop_header_branch
    %11 = sbr.rel (%p9) target = $region8
  $region5: #{tpu_custom_call.1} parent=0 // loop_body
    %s13 = ssub.s32 %s8, 1
    %s14 = ssub.s32 %s8, 2
    %s15 = sadd.s32 %s8, 1
    %s17 = sadd.s32 %s16, 1
    %p20 = scmp.eq.s32.totalorder %s8, 1
    %p21 = scmp.ne.s32.totalorder %s16, %s18
    %p22 = scmp.eq.s32.totalorder %s8, 0
    %p23 = por %p21, %p22
    %p24 = scmp.ne.s32.totalorder %s16, %s18
    %p25 = scmp.eq.s32.totalorder %s13, 1
    %p26 = por %p24, %p25
    %p27 = scmp.ne.s32.totalorder %s18, %s19
    %p28 = scmp.eq.s32.totalorder %s13, 0
    %p29 = por %p27, %p28
    %p30 = scmp.ne.s32.totalorder %s18, %s19
    %p31 = scmp.eq.s32.totalorder %s14, 1
    %p32 = por %p30, %p31
    %p34 = scmp.ne.s32.totalorder %s19, %s33
    %p35 = scmp.eq.s32.totalorder %s14, 0
    %p36 = por %p34, %p35
    %s38 = sadd.s32 %s37, 1
    %p41 = scmp.eq.s32.totalorder %s8, 1
    %p42 = scmp.ne.s32.totalorder %s37, %s39
    %p43 = scmp.eq.s32.totalorder %s8, 0
    %p44 = por %p42, %p43
    %p45 = scmp.ne.s32.totalorder %s37, %s39
    %p46 = scmp.eq.s32.totalorder %s13, 1
    %p47 = por %p45, %p46
    %p48 = scmp.ne.s32.totalorder %s39, %s40
    %p49 = scmp.eq.s32.totalorder %s13, 0
    %p50 = por %p48, %p49
    %p51 = scmp.ne.s32.totalorder %s39, %s40
    %p52 = scmp.eq.s32.totalorder %s14, 1
    %p53 = por %p51, %p52
    %p55 = scmp.ne.s32.totalorder %s40, %s54
    %p56 = scmp.eq.s32.totalorder %s14, 0
    %p57 = por %p55, %p56
    %s58 = ssub.s32 %s8, %s15
    %p59 = scmp.eq.s32.totalorder %s58, 0
    %s61 = sadd.s32 %s60, 1
    %s62 = scalar_select %p59, %s60, %s61
    %p65 = pneg %p59
    %p66 = scmp.eq.s32.totalorder %s8, 1
    %p67 = por %p65, %p66
    %p68 = scmp.ne.s32.totalorder %s60, %s63
    %p69 = scmp.eq.s32.totalorder %s8, 0
    %p70 = por %p68, %p69
    %p71 = scmp.ne.s32.totalorder %s60, %s63
    %p72 = scmp.eq.s32.totalorder %s13, 1
    %p73 = por %p71, %p72
    %p74 = scmp.ne.s32.totalorder %s63, %s64
    %p75 = scmp.eq.s32.totalorder %s13, 0
    %p76 = por %p74, %p75
    %p77 = scmp.ne.s32.totalorder %s63, %s64
    %p78 = scmp.eq.s32.totalorder %s14, 1
    %p79 = por %p77, %p78
    %p81 = scmp.ne.s32.totalorder %s64, %s80
    %p82 = scmp.eq.s32.totalorder %s14, 0
    %p83 = por %p81, %p82
    %p84 = scmp.le.s32.totalorder 1, %s8
    %p85 = scmp.lt.s32.totalorder %s8, 3
    %p86 = pnand %p84, %p85
    %p87 = pneg %p86
    // Predicated region
    $region9: #{tpu_custom_call.1} parent=5 // pred_check
      _
    $region10: #{tpu_custom_call.1} parent=5 // pred_check_branch
      %89 = sbr.rel (%p86) target = $region12
    $region11: #{tpu_custom_call.1} parent=5 // pred_region
      %s90 = ssub.s32 %s8, 1
      // Predicated region
      $region13: #{tpu_custom_call.1} parent=11 // pred_check
        %p91 = pneg %p29
      $region14: #{tpu_custom_call.1} parent=11 // pred_check_branch
        %93 = sbr.rel (%p91) target = $region16
      $region15: #{tpu_custom_call.1} parent=11 // pred_region
        _
      $region16: #{tpu_custom_call.1} parent=11 // pred_fallthru
        _
      // Predicated region
      $region17: #{tpu_custom_call.1} parent=11 // pred_check
        %p94 = pneg %p50
      $region18: #{tpu_custom_call.1} parent=11 // pred_check_branch
        %96 = sbr.rel (%p94) target = $region20
      $region19: #{tpu_custom_call.1} parent=11 // pred_region
        _
      $region20: #{tpu_custom_call.1} parent=11 // pred_fallthru
        _
    $region12: #{tpu_custom_call.1} parent=5 // pred_fallthru
      _
    %p97 = scmp.lt.s32.totalorder %s8, 2
    // Predicated region
    $region21: #{tpu_custom_call.1} parent=5 // pred_check
      %p98 = pneg %p97
    $region22: #{tpu_custom_call.1} parent=5 // pred_check_branch
      %100 = sbr.rel (%p98) target = $region24
    $region23: #{tpu_custom_call.1} parent=5 // pred_region
      _
    $region24: #{tpu_custom_call.1} parent=5 // pred_fallthru
      _
    %p101 = scmp.le.s32.totalorder 1, %s8
    %p102 = scmp.lt.s32.totalorder %s8, 3
    %p103 = pnand %p101, %p102
    %p104 = pneg %p103
    // Predicated region
    $region25: #{tpu_custom_call.1} parent=5 // pred_check
      _
    $region26: #{tpu_custom_call.1} parent=5 // pred_check_branch
      %106 = sbr.rel (%p103) target = $region28
    $region27: #{tpu_custom_call.1} parent=5 // pred_region
      %s107 = ssub.s32 %s8, 1
      %p108 = pneg %p29
      %p109 = pneg %p26
      %p110 = pneg %p50
      %p111 = pneg %p47
      %p112 = pneg %p76
      %p113 = pneg %p73
      %p114 = scmp.lt.s32.totalorder %s13, 1
      %s115 = scalar_select %p114, %s13, 1
      %s116 = scalar_lea.vmem %s2, %s115
      %p117 = scmp.lt.s32.totalorder %s13, 1
      %s118 = scalar_select %p117, %s13, 1
      %s119 = scalar_lea.vmem %s2, %s118
      %v120 = vld [vmem:[%s0] sm:$0xff]
      %v121 = vld [vmem:[%s1] sm:$0xff]
      %v122 = vmul.f32 %v120, %v120
      %vm123 = vcmask 261120
      %v124 = vsel %vm123, %v122, 0.0
      %125 = vadd.xlane.f32.xlu0 %v124
      %v126 = vpop.xlane.xlu0 %125
      %v128 = vsel %vm123, 1.0, 0
      %v131 = vsel %vm123, %v122, 0
      %133 = vmatprep.subr.mxu0 0.0
      %134 = vmatpush1.xpose.msra.mxu0 0.0
      %135 = vmatprep.subr.mxu0 0.0
      %136 = vmatpush1.xpose.msra.mxu0 0.0
      %137 = vmatprep.subr.mxu0 0.0
      %138 = vmatpush1.xpose.msra.mxu0 0.0
      %139 = vmatprep.subr.mxu0 0.0
      %140 = vmatpush1.xpose.msra.mxu0 0.0
      %141 = vmatprep.subr.mxu0 0.0
      %142 = vmatpush1.xpose.msra.mxu0 0.0
      %143 = vmatprep.subr.mxu0 0.0
      %144 = vmatpush1.xpose.msra.mxu0 0.0
      %145 = vmatprep.subr.mxu0 0.0
      %146 = vmatpush1.xpose.msra.mxu0 0.0
      %147 = vmatprep.subr.mxu0 0.0
      %148 = vmatpush1.xpose.msra.mxu0 0.0
      %149 = vmatprep.subr.mxu0 0.0
      %150 = vmatpush1.xpose.msra.mxu0 0.0
      %151 = vmatprep.subr.mxu0 0.0
      %152 = vmatpush1.xpose.msra.mxu0 0.0
      %153 = vmatprep.subr.mxu0 0.0
      %154 = vmatpush1.xpose.msra.mxu0 0.0
      %155 = vmatprep.subr.mxu0 0.0
      %156 = vmatpush1.xpose.msra.mxu0 0.0
      %157 = vmatprep.subr.mxu0 0.0
      %158 = vmatpush1.xpose.msra.mxu0 0.0
      %159 = vmatprep.subr.mxu0 0.0
      %160 = vmatpush1.xpose.msra.mxu0 0.0
      %161 = vmatprep.subr.mxu0 0.0
      %162 = vmatpush1.xpose.msra.mxu0 0.0
      %163 = vmatprep.subr.mxu0 0.0
      %164 = vmatpush1.xpose.msra.mxu0 %v131
      %165 = vmatprep.subr.mxu0 0.0
      %166 = vmatpush2.xpose.msra.mxu0 0.0
      %167 = vmatprep.subr.mxu0 0.0
      %168 = vmatpush2.xpose.msra.mxu0 0.0
      %169 = vmatprep.subr.mxu0 0.0
      %170 = vmatpush2.xpose.msra.mxu0 0.0
      %171 = vmatprep.subr.mxu0 0.0
      %172 = vmatpush2.xpose.msra.mxu0 0.0
      %173 = vmatprep.subr.mxu0 0.0
      %174 = vmatpush2.xpose.msra.mxu0 0.0
      %175 = vmatprep.subr.mxu0 0.0
      %176 = vmatpush2.xpose.msra.mxu0 0.0
      %177 = vmatprep.subr.mxu0 0.0
      %178 = vmatpush2.xpose.msra.mxu0 0.0
      %179 = vmatprep.subr.mxu0 0.0
      %180 = vmatpush2.xpose.msra.mxu0 0.0
      %181 = vmatprep.subr.mxu0 0.0
      %182 = vmatpush2.xpose.msra.mxu0 0.0
      %183 = vmatprep.subr.mxu0 0.0
      %184 = vmatpush2.xpose.msra.mxu0 0.0
      %185 = vmatprep.subr.mxu0 0.0
      %186 = vmatpush2.xpose.msra.mxu0 0.0
      %187 = vmatprep.subr.mxu0 0.0
      %188 = vmatpush2.xpose.msra.mxu0 0.0
      %189 = vmatprep.subr.mxu0 0.0
      %190 = vmatpush2.xpose.msra.mxu0 0.0
      %191 = vmatprep.subr.mxu0 0.0
      %192 = vmatpush2.xpose.msra.mxu0 0.0
      %193 = vmatprep.subr.mxu0 0.0
      %194 = vmatpush2.xpose.msra.mxu0 0.0
      %195 = vmatprep.subr.mxu0 0.0
      %196 = vmatpush2.xpose.msra.mxu0 0.0
      %197 = vmatprep.mubr.f32.mxu0 0.0
      %198 = vmatmul.mubr.f32.gmra.mxu0 %v128
      %v199 = vpop.f32.mrf.mxu0
      %v200 = vadd.f32 0.0, %v199
      %v201 = vpop.f32.mrf.mxu0
      %202 = vdwg.mxu0
      %v203 = vlaneseq
      %v204 = vshrl.u32 %v203, 7
      %v205 = vlaneseq
      %v206 = vand.u32 %v205, 127
      %vm207 = vcmp.eq.s32.totalorder %v204, %v206
      %s208 = smul.u32 %s13, 4
      %p209 = scmp.lt.s32.totalorder %s208, 7
      %s210 = scalar_select %p209, %s208, 7
      %s211 = scalar_lea.vmem %s0, %s210
      %v212 = vld [vmem:[%s211] sm:$0x1]
      %v213 = vmul.f32 %v212, %v212
      %vm214 = vcmask 253952
      %v215 = vsel %vm214, %v213, 0.0
      %216 = vadd.xlane.f32.xlu0 %v215
      %v217 = vpop.xlane.xlu0 %216
      %v219 = vsel %vm123, %v212, 0
      %v222 = vsel %vm123, %v120, 0
      %224 = vmatprep.subr.mxu0 0.0
      %225 = vmatpush1.xpose.msra.mxu0 0.0
      %226 = vmatprep.subr.mxu0 0.0
      %227 = vmatpush1.xpose.msra.mxu0 0.0
      %228 = vmatprep.subr.mxu0 0.0
      %229 = vmatpush1.xpose.msra.mxu0 0.0
      %230 = vmatprep.subr.mxu0 0.0
      %231 = vmatpush1.xpose.msra.mxu0 0.0
      %232 = vmatprep.subr.mxu0 0.0
      %233 = vmatpush1.xpose.msra.mxu0 0.0
      %234 = vmatprep.subr.mxu0 0.0
      %235 = vmatpush1.xpose.msra.mxu0 0.0
      %236 = vmatprep.subr.mxu0 0.0
      %237 = vmatpush1.xpose.msra.mxu0 0.0
      %238 = vmatprep.subr.mxu0 0.0
      %239 = vmatpush1.xpose.msra.mxu0 0.0
      %240 = vmatprep.subr.mxu0 0.0
      %241 = vmatpush1.xpose.msra.mxu0 0.0
      %242 = vmatprep.subr.mxu0 0.0
      %243 = vmatpush1.xpose.msra.mxu0 0.0
      %244 = vmatprep.subr.mxu0 0.0
      %245 = vmatpush1.xpose.msra.mxu0 0.0
      %246 = vmatprep.subr.mxu0 0.0
      %247 = vmatpush1.xpose.msra.mxu0 0.0
      %248 = vmatprep.subr.mxu0 0.0
      %249 = vmatpush1.xpose.msra.mxu0 0.0
      %250 = vmatprep.subr.mxu0 0.0
      %251 = vmatpush1.xpose.msra.mxu0 0.0
      %252 = vmatprep.subr.mxu0 0.0
      %253 = vmatpush1.xpose.msra.mxu0 0.0
      %254 = vmatprep.subr.mxu0 0.0
      %255 = vmatpush1.xpose.msra.mxu0 %v222
      %256 = vmatprep.subr.mxu0 0.0
      %257 = vmatpush2.xpose.msra.mxu0 0.0
      %258 = vmatprep.subr.mxu0 0.0
      %259 = vmatpush2.xpose.msra.mxu0 0.0
      %260 = vmatprep.subr.mxu0 0.0
      %261 = vmatpush2.xpose.msra.mxu0 0.0
      %262 = vmatprep.subr.mxu0 0.0
      %263 = vmatpush2.xpose.msra.mxu0 0.0
      %264 = vmatprep.subr.mxu0 0.0
      %265 = vmatpush2.xpose.msra.mxu0 0.0
      %266 = vmatprep.subr.mxu0 0.0
      %267 = vmatpush2.xpose.msra.mxu0 0.0
      %268 = vmatprep.subr.mxu0 0.0
      %269 = vmatpush2.xpose.msra.mxu0 0.0
      %270 = vmatprep.subr.mxu0 0.0
      %271 = vmatpush2.xpose.msra.mxu0 0.0
      %272 = vmatprep.subr.mxu0 0.0
      %273 = vmatpush2.xpose.msra.mxu0 0.0
      %274 = vmatprep.subr.mxu0 0.0
      %275 = vmatpush2.xpose.msra.mxu0 0.0
      %276 = vmatprep.subr.mxu0 0.0
      %277 = vmatpush2.xpose.msra.mxu0 0.0
      %278 = vmatprep.subr.mxu0 0.0
      %279 = vmatpush2.xpose.msra.mxu0 0.0
      %280 = vmatprep.subr.mxu0 0.0
      %281 = vmatpush2.xpose.msra.mxu0 0.0
      %282 = vmatprep.subr.mxu0 0.0
      %283 = vmatpush2.xpose.msra.mxu0 0.0
      %284 = vmatprep.subr.mxu0 0.0
      %285 = vmatpush2.xpose.msra.mxu0 0.0
      %286 = vmatprep.subr.mxu0 0.0
      %287 = vmatpush2.xpose.msra.mxu0 0.0
      %288 = vmatprep.mubr.f32.mxu0 0.0
      %289 = vmatmul.mubr.f32.gmra.mxu0 %v219
      %v290 = vpop.f32.mrf.mxu0
      %v291 = vadd.f32 0.0, %v290
      %v292 = vpop.f32.mrf.mxu0
      %293 = vdwg.mxu0
      %v294 = vlaneseq
      %v295 = vshrl.u32 %v294, 7
      %v296 = vsub.s32 0, %v295
      %v297 = vrot.slane %v212, %v296
      %v298 = vmul.f32 %v120, %v297
      %v299 = vsel %vm123, %v298, 0.0
      %300 = vadd.xlane.f32.xlu0 %v299
      %v301 = vpop.xlane.xlu0 %300
      %v302 = vadd.f32 %v200, %v217
      %v303 = vmul.f32 %v291, 2.0
      %v304 = vsub.f32 %v302, %v303
      %v305 = vmax.f32 %v304, 1e-12
      %v306 = vrsqrt.pop %v305
      %v307 = vmul.f32 %v305, %v306
      %vm308 = vcmp.eq.f32.partialorder %v305, inf
      %v309 = vsel %vm308, %v305, %v307
      %vm310 = vcmp.eq.f32.partialorder %v305, 0.0
      %v311 = vand.u32 %v305, 2147483648
      %v312 = vsel %vm310, %v311, %v309
      %v313 = vlaneseq
      %v314 = vshrl.u32 %v313, 7
      %v315 = vsub.s32 0, %v314
      %v316 = vrot.slane %v217, %v315
      %v317 = vadd.f32 %v126, %v316
      %v318 = vmul.f32 %v301, 2.0
      %v319 = vsub.f32 %v317, %v318
      %v320 = vmax.f32 %v319, 1e-12
      %v321 = vrsqrt.pop %v320
      %v322 = vmul.f32 %v320, %v321
      %vm323 = vcmp.eq.f32.partialorder %v320, inf
      %v324 = vsel %vm323, %v320, %v322
      %vm325 = vcmp.eq.f32.partialorder %v320, 0.0
      %v326 = vand.u32 %v320, 2147483648
      %v327 = vsel %vm325, %v326, %v324
      %s328 = scalar_lea.vmem %s1, %s210
      %v329 = vld [vmem:[%s328] sm:$0x1]
      %v330 = vlaneseq
      %v331 = vshrl.u32 %v330, 7
      %v332 = vsub.s32 0, %v331
      %v333 = vrot.slane %v329, %v332
      %vm334 = vcmp.eq.s32.totalorder %v121, %v333
      %v335 = vsel %vm334, 1, 0
      %v336 = vcvt.s32.f32 %v335
      %v337 = vlaneseq
      %v338 = vshrl.u32 %v337, 7
      %v339 = vsub.s32 0, %v338
      %v340 = vrot.slane %v312, %v339
      %vm341 = vcmp.ge.f32.partialorder %v340, %v327
      %vm342 = vmor %vm207, %vm341
      %v343 = vsel %vm342, 1.0, 0.0
      %vm344 = vcmask 64512
      %v346 = vsel %vm344, %v343, 0
      %348 = vmatprep.subr.mxu0 0.0
      %349 = vmatpush1.msra.mxu0 0.0
      %350 = vmatprep.subr.mxu0 0.0
      %351 = vmatpush1.msra.mxu0 0.0
      %352 = vmatprep.subr.mxu0 0.0
      %353 = vmatpush1.msra.mxu0 0.0
      %354 = vmatprep.subr.mxu0 0.0
      %355 = vmatpush1.msra.mxu0 0.0
      %356 = vmatprep.subr.mxu0 0.0
      %357 = vmatpush1.msra.mxu0 0.0
      %358 = vmatprep.subr.mxu0 0.0
      %359 = vmatpush1.msra.mxu0 0.0
      %360 = vmatprep.subr.mxu0 0.0
      %361 = vmatpush1.msra.mxu0 0.0
      %362 = vmatprep.subr.mxu0 0.0
      %363 = vmatpush1.msra.mxu0 0.0
      %364 = vmatprep.subr.mxu0 0.0
      %365 = vmatpush1.msra.mxu0 0.0
      %366 = vmatprep.subr.mxu0 0.0
      %367 = vmatpush1.msra.mxu0 0.0
      %368 = vmatprep.subr.mxu0 0.0
      %369 = vmatpush1.msra.mxu0 0.0
      %370 = vmatprep.subr.mxu0 0.0
      %371 = vmatpush1.msra.mxu0 0.0
      %372 = vmatprep.subr.mxu0 0.0
      %373 = vmatpush1.msra.mxu0 0.0
      %374 = vmatprep.subr.mxu0 0.0
      %375 = vmatpush1.msra.mxu0 0.0
      %376 = vmatprep.subr.mxu0 0.0
      %377 = vmatpush1.msra.mxu0 0.0
      %378 = vmatprep.subr.mxu0 0.0
      %379 = vmatpush1.msra.mxu0 %v336
      %380 = vmatprep.subr.mxu0 0.0
      %381 = vmatpush2.msra.mxu0 0.0
      %382 = vmatprep.subr.mxu0 0.0
      %383 = vmatpush2.msra.mxu0 0.0
      %384 = vmatprep.subr.mxu0 0.0
      %385 = vmatpush2.msra.mxu0 0.0
      %386 = vmatprep.subr.mxu0 0.0
      %387 = vmatpush2.msra.mxu0 0.0
      %388 = vmatprep.subr.mxu0 0.0
      %389 = vmatpush2.msra.mxu0 0.0
      %390 = vmatprep.subr.mxu0 0.0
      %391 = vmatpush2.msra.mxu0 0.0
      %392 = vmatprep.subr.mxu0 0.0
      %393 = vmatpush2.msra.mxu0 0.0
      %394 = vmatprep.subr.mxu0 0.0
      %395 = vmatpush2.msra.mxu0 0.0
      %396 = vmatprep.subr.mxu0 0.0
      %397 = vmatpush2.msra.mxu0 0.0
      %398 = vmatprep.subr.mxu0 0.0
      %399 = vmatpush2.msra.mxu0 0.0
      %400 = vmatprep.subr.mxu0 0.0
      %401 = vmatpush2.msra.mxu0 0.0
      %402 = vmatprep.subr.mxu0 0.0
      %403 = vmatpush2.msra.mxu0 0.0
      %404 = vmatprep.subr.mxu0 0.0
      %405 = vmatpush2.msra.mxu0 0.0
      %406 = vmatprep.subr.mxu0 0.0
      %407 = vmatpush2.msra.mxu0 0.0
      %408 = vmatprep.subr.mxu0 0.0
      %409 = vmatpush2.msra.mxu0 0.0
      %410 = vmatprep.subr.mxu0 0.0
      %411 = vmatpush2.msra.mxu0 0.0
      %412 = vmatprep.mubr.f32.mxu0 0.0
      %413 = vmatmul.mubr.f32.gmra.mxu0 %v346
      %v414 = vpop.f32.mrf.mxu0
      %v415 = vadd.f32 0.0, %v414
      %v416 = vpop.f32.mrf.mxu0
      %417 = vdwg.mxu0
      %v418 = vsub.f32 1.0, %v336
      %419 = vmatprep.subr.mxu0 0.0
      %420 = vmatpush1.msra.mxu0 0.0
      %421 = vmatprep.subr.mxu0 0.0
      %422 = vmatpush1.msra.mxu0 0.0
      %423 = vmatprep.subr.mxu0 0.0
      %424 = vmatpush1.msra.mxu0 0.0
      %425 = vmatprep.subr.mxu0 0.0
      %426 = vmatpush1.msra.mxu0 0.0
      %427 = vmatprep.subr.mxu0 0.0
      %428 = vmatpush1.msra.mxu0 0.0
      %429 = vmatprep.subr.mxu0 0.0
      %430 = vmatpush1.msra.mxu0 0.0
      %431 = vmatprep.subr.mxu0 0.0
      %432 = vmatpush1.msra.mxu0 0.0
      %433 = vmatprep.subr.mxu0 0.0
      %434 = vmatpush1.msra.mxu0 0.0
      %435 = vmatprep.subr.mxu0 0.0
      %436 = vmatpush1.msra.mxu0 0.0
      %437 = vmatprep.subr.mxu0 0.0
      %438 = vmatpush1.msra.mxu0 0.0
      %439 = vmatprep.subr.mxu0 0.0
      %440 = vmatpush1.msra.mxu0 0.0
      %441 = vmatprep.subr.mxu0 0.0
      %442 = vmatpush1.msra.mxu0 0.0
      %443 = vmatprep.subr.mxu0 0.0
      %444 = vmatpush1.msra.mxu0 0.0
      %445 = vmatprep.subr.mxu0 0.0
      %446 = vmatpush1.msra.mxu0 0.0
      %447 = vmatprep.subr.mxu0 0.0
      %448 = vmatpush1.msra.mxu0 0.0
      %449 = vmatprep.subr.mxu0 0.0
      %450 = vmatpush1.msra.mxu0 %v418
      %451 = vmatprep.subr.mxu0 0.0
      %452 = vmatpush2.msra.mxu0 0.0
      %453 = vmatprep.subr.mxu0 0.0
      %454 = vmatpush2.msra.mxu0 0.0
      %455 = vmatprep.subr.mxu0 0.0
      %456 = vmatpush2.msra.mxu0 0.0
      %457 = vmatprep.subr.mxu0 0.0
      %458 = vmatpush2.msra.mxu0 0.0
      %459 = vmatprep.subr.mxu0 0.0
      %460 = vmatpush2.msra.mxu0 0.0
      %461 = vmatprep.subr.mxu0 0.0
      %462 = vmatpush2.msra.mxu0 0.0
      %463 = vmatprep.subr.mxu0 0.0
      %464 = vmatpush2.msra.mxu0 0.0
      %465 = vmatprep.subr.mxu0 0.0
      %466 = vmatpush2.msra.mxu0 0.0
      %467 = vmatprep.subr.mxu0 0.0
      %468 = vmatpush2.msra.mxu0 0.0
      %469 = vmatprep.subr.mxu0 0.0
      %470 = vmatpush2.msra.mxu0 0.0
      %471 = vmatprep.subr.mxu0 0.0
      %472 = vmatpush2.msra.mxu0 0.0
      %473 = vmatprep.subr.mxu0 0.0
      %474 = vmatpush2.msra.mxu0 0.0
      %475 = vmatprep.subr.mxu0 0.0
      %476 = vmatpush2.msra.mxu0 0.0
      %477 = vmatprep.subr.mxu0 0.0
      %478 = vmatpush2.msra.mxu0 0.0
      %479 = vmatprep.subr.mxu0 0.0
      %480 = vmatpush2.msra.mxu0 0.0
      %481 = vmatprep.subr.mxu0 0.0
      %482 = vmatpush2.msra.mxu0 0.0
      %483 = vmatprep.mubr.f32.mxu0 0.0
      %484 = vmatmul.mubr.f32.gmra.mxu0 %v346
      %v485 = vpop.f32.mrf.mxu0
      %v486 = vadd.f32 0.0, %v485
      %v487 = vpop.f32.mrf.mxu0
      %488 = vdwg.mxu0
      %vm489 = vcmask 7168
      %v490 = vsel %vm489, %v336, 0.0
      %v491 = vrot.slane %v490, 4
      %v492 = vadd.f32 %v490, %v491
      %v493 = vrot.slane %v492, 2
      %v494 = vadd.f32 %v492, %v493
      %v495 = vrot.slane %v494, 1
      %v496 = vadd.f32 %v494, %v495
      %v497 = vmul.f32 %v496, 0.5
      %v498 = vfloor.f32 %v497
      %v499 = vsub.f32 8.0, %v496
      %v500 = vmul.f32 %v499, 0.5
      %v501 = vfloor.f32 %v500
      %v502 = vsub.f32 %v498, 0.5
      %vm503 = vcmp.ge.f32.partialorder %v415, %v502
      %vm504 = vmand %vm334, %vm503
      %vm505 = vmxor %vm334, 1
      %v506 = vsub.f32 %v501, 0.5
      %vm507 = vcmp.ge.f32.partialorder %v486, %v506
      %vm508 = vmand %vm505, %vm507
      %v509 = vsel %vm504, %v327, -1e+30
      %v510 = vsel %vm489, %v509, -inf
      %v511 = vrot.slane %v510, 4
      %v512 = vmax.f32 %v510, %v511
      %v513 = vrot.slane %v512, 2
      %v514 = vmax.f32 %v512, %v513
      %v515 = vrot.slane %v514, 1
      %v516 = vmax.f32 %v514, %v515
      %v517 = vsel %vm508, %v327, -1e+30
      %v518 = vsel %vm489, %v517, -inf
      %v519 = vrot.slane %v518, 4
      %v520 = vmax.f32 %v518, %v519
      %v521 = vrot.slane %v520, 2
      %v522 = vmax.f32 %v520, %v521
      %v523 = vrot.slane %v522, 1
      %v524 = vmax.f32 %v522, %v523
      %v525 = vmul.f32 %v327, %v327
      %v526 = vrot.slane %v525, 4
      %v527 = vadd.f32 %v525, %v526
      %v528 = vrot.slane %v527, 2
      %v529 = vadd.f32 %v527, %v528
      %v530 = vrot.slane %v529, 1
      %v531 = vadd.f32 %v529, %v530
      %v532 = vrsqrt.pop %v531
      %v533 = vmul.f32 %v531, %v532
      %vm534 = vcmp.eq.f32.partialorder %v531, inf
      %v535 = vsel %vm534, %v531, %v533
      %vm536 = vcmp.eq.f32.partialorder %v531, 0.0
      %v537 = vand.u32 %v531, 2147483648
      %v538 = vsel %vm536, %v537, %v535
      %vm539 = vcmp.gt.f32.partialorder %v538, 1e-05
      %v540 = vrcp.pop %v538
      %v541 = vmul.f32 1e-05, %v540
      %v542 = vsel %vm539, %v541, 1.0
      %v543 = vmul.f32 %v542, 100000.0
      %v544 = vsub.f32 %v524, %v516
      %v545 = vand.u32 2147483647, %v544
      %v546 = vmul.f32 %v543, %v545
      %p547 = scmp.lt.s32.totalorder %s208, 8
      %s548 = scalar_select %p547, 1, 0
      %v549 = vstv %s548
      %vm550 = vcmp.eq.s32.totalorder %v549, 1
      %v551 = vsel %vm550, %v546, 0.0
      %v552 = vadd.f32 %v551, 0.0
      %s553 = sadd.s32 %s208, 1
      %p554 = scmp.lt.s32.totalorder %s553, 7
      %s555 = scalar_select %p554, %s553, 7
      %s556 = scalar_lea.vmem %s0, %s555
      %v557 = vld [vmem:[%s556] sm:$0x1]
      %v558 = vmul.f32 %v557, %v557
      %v559 = vsel %vm214, %v558, 0.0
      %560 = vadd.xlane.f32.xlu0 %v559
      %v561 = vpop.xlane.xlu0 %560
      %v563 = vsel %vm123, %v557, 0
      %565 = vmatprep.subr.mxu0 0.0
      %566 = vmatpush1.xpose.msra.mxu0 0.0
      %567 = vmatprep.subr.mxu0 0.0
      %568 = vmatpush1.xpose.msra.mxu0 0.0
      %569 = vmatprep.subr.mxu0 0.0
      %570 = vmatpush1.xpose.msra.mxu0 0.0
      %571 = vmatprep.subr.mxu0 0.0
      %572 = vmatpush1.xpose.msra.mxu0 0.0
      %573 = vmatprep.subr.mxu0 0.0
      %574 = vmatpush1.xpose.msra.mxu0 0.0
      %575 = vmatprep.subr.mxu0 0.0
      %576 = vmatpush1.xpose.msra.mxu0 0.0
      %577 = vmatprep.subr.mxu0 0.0
      %578 = vmatpush1.xpose.msra.mxu0 0.0
      %579 = vmatprep.subr.mxu0 0.0
      %580 = vmatpush1.xpose.msra.mxu0 0.0
      %581 = vmatprep.subr.mxu0 0.0
      %582 = vmatpush1.xpose.msra.mxu0 0.0
      %583 = vmatprep.subr.mxu0 0.0
      %584 = vmatpush1.xpose.msra.mxu0 0.0
      %585 = vmatprep.subr.mxu0 0.0
      %586 = vmatpush1.xpose.msra.mxu0 0.0
      %587 = vmatprep.subr.mxu0 0.0
      %588 = vmatpush1.xpose.msra.mxu0 0.0
      %589 = vmatprep.subr.mxu0 0.0
      %590 = vmatpush1.xpose.msra.mxu0 0.0
      %591 = vmatprep.subr.mxu0 0.0
      %592 = vmatpush1.xpose.msra.mxu0 0.0
      %593 = vmatprep.subr.mxu0 0.0
      %594 = vmatpush1.xpose.msra.mxu0 0.0
      %595 = vmatprep.subr.mxu0 0.0
      %596 = vmatpush1.xpose.msra.mxu0 %v222
      %597 = vmatprep.subr.mxu0 0.0
      %598 = vmatpush2.xpose.msra.mxu0 0.0
      %599 = vmatprep.subr.mxu0 0.0
      %600 = vmatpush2.xpose.msra.mxu0 0.0
      %601 = vmatprep.subr.mxu0 0.0
      %602 = vmatpush2.xpose.msra.mxu0 0.0
      %603 = vmatprep.subr.mxu0 0.0
      %604 = vmatpush2.xpose.msra.mxu0 0.0
      %605 = vmatprep.subr.mxu0 0.0
      %606 = vmatpush2.xpose.msra.mxu0 0.0
      %607 = vmatprep.subr.mxu0 0.0
      %608 = vmatpush2.xpose.msra.mxu0 0.0
      %609 = vmatprep.subr.mxu0 0.0
      %610 = vmatpush2.xpose.msra.mxu0 0.0
      %611 = vmatprep.subr.mxu0 0.0
      %612 = vmatpush2.xpose.msra.mxu0 0.0
      %613 = vmatprep.subr.mxu0 0.0
      %614 = vmatpush2.xpose.msra.mxu0 0.0
      %615 = vmatprep.subr.mxu0 0.0
      %616 = vmatpush2.xpose.msra.mxu0 0.0
      %617 = vmatprep.subr.mxu0 0.0
      %618 = vmatpush2.xpose.msra.mxu0 0.0
      %619 = vmatprep.subr.mxu0 0.0
      %620 = vmatpush2.xpose.msra.mxu0 0.0
      %621 = vmatprep.subr.mxu0 0.0
      %622 = vmatpush2.xpose.msra.mxu0 0.0
      %623 = vmatprep.subr.mxu0 0.0
      %624 = vmatpush2.xpose.msra.mxu0 0.0
      %625 = vmatprep.subr.mxu0 0.0
      %626 = vmatpush2.xpose.msra.mxu0 0.0
      %627 = vmatprep.subr.mxu0 0.0
      %628 = vmatpush2.xpose.msra.mxu0 0.0
      %629 = vmatprep.mubr.f32.mxu0 0.0
      %630 = vmatmul.mubr.f32.gmra.mxu0 %v563
      %v631 = vpop.f32.mrf.mxu0
      %v632 = vadd.f32 0.0, %v631
      %v633 = vpop.f32.mrf.mxu0
      %634 = vdwg.mxu0
      %v635 = vlaneseq
      %v636 = vshrl.u32 %v635, 7
      %v637 = vsub.s32 0, %v636
      %v638 = vrot.slane %v557, %v637
      %v639 = vmul.f32 %v120, %v638
      %v640 = vsel %vm123, %v639, 0.0
      %641 = vadd.xlane.f32.xlu0 %v640
      %v642 = vpop.xlane.xlu0 %641
      %v643 = vadd.f32 %v200, %v561
      %v644 = vmul.f32 %v632, 2.0
      %v645 = vsub.f32 %v643, %v644
      %v646 = vmax.f32 %v645, 1e-12
      %v647 = vrsqrt.pop %v646
      %v648 = vmul.f32 %v646, %v647
      %vm649 = vcmp.eq.f32.partialorder %v646, inf
      %v650 = vsel %vm649, %v646, %v648
      %vm651 = vcmp.eq.f32.partialorder %v646, 0.0
      %v652 = vand.u32 %v646, 2147483648
      %v653 = vsel %vm651, %v652, %v650
      %v654 = vlaneseq
      %v655 = vshrl.u32 %v654, 7
      %v656 = vsub.s32 0, %v655
      %v657 = vrot.slane %v561, %v656
      %v658 = vadd.f32 %v126, %v657
      %v659 = vmul.f32 %v642, 2.0
      %v660 = vsub.f32 %v658, %v659
      %v661 = vmax.f32 %v660, 1e-12
      %v662 = vrsqrt.pop %v661
      %v663 = vmul.f32 %v661, %v662
      %vm664 = vcmp.eq.f32.partialorder %v661, inf
      %v665 = vsel %vm664, %v661, %v663
      %vm666 = vcmp.eq.f32.partialorder %v661, 0.0
      %v667 = vand.u32 %v661, 2147483648
      %v668 = vsel %vm666, %v667, %v665
      %s669 = scalar_lea.vmem %s1, %s555
      %v670 = vld [vmem:[%s669] sm:$0x1]
      %v671 = vlaneseq
      %v672 = vshrl.u32 %v671, 7
      %v673 = vsub.s32 0, %v672
      %v674 = vrot.slane %v670, %v673
      %vm675 = vcmp.eq.s32.totalorder %v121, %v674
      %v676 = vsel %vm675, 1, 0
      %v677 = vcvt.s32.f32 %v676
      %v678 = vlaneseq
      %v679 = vshrl.u32 %v678, 7
      %v680 = vsub.s32 0, %v679
      %v681 = vrot.slane %v653, %v680
      %vm682 = vcmp.ge.f32.partialorder %v681, %v668
      %vm683 = vmor %vm207, %vm682
      %v684 = vsel %vm683, 1.0, 0.0
      %v686 = vsel %vm344, %v684, 0
      %688 = vmatprep.subr.mxu0 0.0
      %689 = vmatpush1.msra.mxu0 0.0
      %690 = vmatprep.subr.mxu0 0.0
      %691 = vmatpush1.msra.mxu0 0.0
      %692 = vmatprep.subr.mxu0 0.0
      %693 = vmatpush1.msra.mxu0 0.0
      %694 = vmatprep.subr.mxu0 0.0
      %695 = vmatpush1.msra.mxu0 0.0
      %696 = vmatprep.subr.mxu0 0.0
      %697 = vmatpush1.msra.mxu0 0.0
      %698 = vmatprep.subr.mxu0 0.0
      %699 = vmatpush1.msra.mxu0 0.0
      %700 = vmatprep.subr.mxu0 0.0
      %701 = vmatpush1.msra.mxu0 0.0
      %702 = vmatprep.subr.mxu0 0.0
      %703 = vmatpush1.msra.mxu0 0.0
      %704 = vmatprep.subr.mxu0 0.0
      %705 = vmatpush1.msra.mxu0 0.0
      %706 = vmatprep.subr.mxu0 0.0
      %707 = vmatpush1.msra.mxu0 0.0
      %708 = vmatprep.subr.mxu0 0.0
      %709 = vmatpush1.msra.mxu0 0.0
      %710 = vmatprep.subr.mxu0 0.0
      %711 = vmatpush1.msra.mxu0 0.0
      %712 = vmatprep.subr.mxu0 0.0
      %713 = vmatpush1.msra.mxu0 0.0
      %714 = vmatprep.subr.mxu0 0.0
      %715 = vmatpush1.msra.mxu0 0.0
      %716 = vmatprep.subr.mxu0 0.0
      %717 = vmatpush1.msra.mxu0 0.0
      %718 = vmatprep.subr.mxu0 0.0
      %719 = vmatpush1.msra.mxu0 %v677
      %720 = vmatprep.subr.mxu0 0.0
      %721 = vmatpush2.msra.mxu0 0.0
      %722 = vmatprep.subr.mxu0 0.0
      %723 = vmatpush2.msra.mxu0 0.0
      %724 = vmatprep.subr.mxu0 0.0
      %725 = vmatpush2.msra.mxu0 0.0
      %726 = vmatprep.subr.mxu0 0.0
      %727 = vmatpush2.msra.mxu0 0.0
      %728 = vmatprep.subr.mxu0 0.0
      %729 = vmatpush2.msra.mxu0 0.0
      %730 = vmatprep.subr.mxu0 0.0
      %731 = vmatpush2.msra.mxu0 0.0
      %732 = vmatprep.subr.mxu0 0.0
      %733 = vmatpush2.msra.mxu0 0.0
      %734 = vmatprep.subr.mxu0 0.0
      %735 = vmatpush2.msra.mxu0 0.0
      %736 = vmatprep.subr.mxu0 0.0
      %737 = vmatpush2.msra.mxu0 0.0
      %738 = vmatprep.subr.mxu0 0.0
      %739 = vmatpush2.msra.mxu0 0.0
      %740 = vmatprep.subr.mxu0 0.0
      %741 = vmatpush2.msra.mxu0 0.0
      %742 = vmatprep.subr.mxu0 0.0
      %743 = vmatpush2.msra.mxu0 0.0
      %744 = vmatprep.subr.mxu0 0.0
      %745 = vmatpush2.msra.mxu0 0.0
      %746 = vmatprep.subr.mxu0 0.0
      %747 = vmatpush2.msra.mxu0 0.0
      %748 = vmatprep.subr.mxu0 0.0
      %749 = vmatpush2.msra.mxu0 0.0
      %750 = vmatprep.subr.mxu0 0.0
      %751 = vmatpush2.msra.mxu0 0.0
      %752 = vmatprep.mubr.f32.mxu0 0.0
      %753 = vmatmul.mubr.f32.gmra.mxu0 %v686
      %v754 = vpop.f32.mrf.mxu0
      %v755 = vadd.f32 0.0, %v754
      %v756 = vpop.f32.mrf.mxu0
      %757 = vdwg.mxu0
      %v758 = vsub.f32 1.0, %v677
      %759 = vmatprep.subr.mxu0 0.0
      %760 = vmatpush1.msra.mxu0 0.0
      %761 = vmatprep.subr.mxu0 0.0
      %762 = vmatpush1.msra.mxu0 0.0
      %763 = vmatprep.subr.mxu0 0.0
      %764 = vmatpush1.msra.mxu0 0.0
      %765 = vmatprep.subr.mxu0 0.0
      %766 = vmatpush1.msra.mxu0 0.0
      %767 = vmatprep.subr.mxu0 0.0
      %768 = vmatpush1.msra.mxu0 0.0
      %769 = vmatprep.subr.mxu0 0.0
      %770 = vmatpush1.msra.mxu0 0.0
      %771 = vmatprep.subr.mxu0 0.0
      %772 = vmatpush1.msra.mxu0 0.0
      %773 = vmatprep.subr.mxu0 0.0
      %774 = vmatpush1.msra.mxu0 0.0
      %775 = vmatprep.subr.mxu0 0.0
      %776 = vmatpush1.msra.mxu0 0.0
      %777 = vmatprep.subr.mxu0 0.0
      %778 = vmatpush1.msra.mxu0 0.0
      %779 = vmatprep.subr.mxu0 0.0
      %780 = vmatpush1.msra.mxu0 0.0
      %781 = vmatprep.subr.mxu0 0.0
      %782 = vmatpush1.msra.mxu0 0.0
      %783 = vmatprep.subr.mxu0 0.0
      %784 = vmatpush1.msra.mxu0 0.0
      %785 = vmatprep.subr.mxu0 0.0
      %786 = vmatpush1.msra.mxu0 0.0
      %787 = vmatprep.subr.mxu0 0.0
      %788 = vmatpush1.msra.mxu0 0.0
      %789 = vmatprep.subr.mxu0 0.0
      %790 = vmatpush1.msra.mxu0 %v758
      %791 = vmatprep.subr.mxu0 0.0
      %792 = vmatpush2.msra.mxu0 0.0
      %793 = vmatprep.subr.mxu0 0.0
      %794 = vmatpush2.msra.mxu0 0.0
      %795 = vmatprep.subr.mxu0 0.0
      %796 = vmatpush2.msra.mxu0 0.0
      %797 = vmatprep.subr.mxu0 0.0
      %798 = vmatpush2.msra.mxu0 0.0
      %799 = vmatprep.subr.mxu0 0.0
      %800 = vmatpush2.msra.mxu0 0.0
      %801 = vmatprep.subr.mxu0 0.0
      %802 = vmatpush2.msra.mxu0 0.0
      %803 = vmatprep.subr.mxu0 0.0
      %804 = vmatpush2.msra.mxu0 0.0
      %805 = vmatprep.subr.mxu0 0.0
      %806 = vmatpush2.msra.mxu0 0.0
      %807 = vmatprep.subr.mxu0 0.0
      %808 = vmatpush2.msra.mxu0 0.0
      %809 = vmatprep.subr.mxu0 0.0
      %810 = vmatpush2.msra.mxu0 0.0
      %811 = vmatprep.subr.mxu0 0.0
      %812 = vmatpush2.msra.mxu0 0.0
      %813 = vmatprep.subr.mxu0 0.0
      %814 = vmatpush2.msra.mxu0 0.0
      %815 = vmatprep.subr.mxu0 0.0
      %816 = vmatpush2.msra.mxu0 0.0
      %817 = vmatprep.subr.mxu0 0.0
      %818 = vmatpush2.msra.mxu0 0.0
      %819 = vmatprep.subr.mxu0 0.0
      %820 = vmatpush2.msra.mxu0 0.0
      %821 = vmatprep.subr.mxu0 0.0
      %822 = vmatpush2.msra.mxu0 0.0
      %823 = vmatprep.mubr.f32.mxu0 0.0
      %824 = vmatmul.mubr.f32.gmra.mxu0 %v686
      %v825 = vpop.f32.mrf.mxu0
      %v826 = vadd.f32 0.0, %v825
      %v827 = vpop.f32.mrf.mxu0
      %828 = vdwg.mxu0
      %v829 = vsel %vm489, %v677, 0.0
      %v830 = vrot.slane %v829, 4
      %v831 = vadd.f32 %v829, %v830
      %v832 = vrot.slane %v831, 2
      %v833 = vadd.f32 %v831, %v832
      %v834 = vrot.slane %v833, 1
      %v835 = vadd.f32 %v833, %v834
      %v836 = vmul.f32 %v835, 0.5
      %v837 = vfloor.f32 %v836
      %v838 = vsub.f32 8.0, %v835
      %v839 = vmul.f32 %v838, 0.5
      %v840 = vfloor.f32 %v839
      %v841 = vsub.f32 %v837, 0.5
      %vm842 = vcmp.ge.f32.partialorder %v755, %v841
      %vm843 = vmand %vm675, %vm842
      %vm844 = vmxor %vm675, 1
      %v845 = vsub.f32 %v840, 0.5
      %vm846 = vcmp.ge.f32.partialorder %v826, %v845
      %vm847 = vmand %vm844, %vm846
      %v848 = vsel %vm843, %v668, -1e+30
      %v849 = vsel %vm489, %v848, -inf
      %v850 = vrot.slane %v849, 4
      %v851 = vmax.f32 %v849, %v850
      %v852 = vrot.slane %v851, 2
      %v853 = vmax.f32 %v851, %v852
      %v854 = vrot.slane %v853, 1
      %v855 = vmax.f32 %v853, %v854
      %v856 = vsel %vm847, %v668, -1e+30
      %v857 = vsel %vm489, %v856, -inf
      %v858 = vrot.slane %v857, 4
      %v859 = vmax.f32 %v857, %v858
      %v860 = vrot.slane %v859, 2
      %v861 = vmax.f32 %v859, %v860
      %v862 = vrot.slane %v861, 1
      %v863 = vmax.f32 %v861, %v862
      %v864 = vmul.f32 %v668, %v668
      %v865 = vrot.slane %v864, 4
      %v866 = vadd.f32 %v864, %v865
      %v867 = vrot.slane %v866, 2
      %v868 = vadd.f32 %v866, %v867
      %v869 = vrot.slane %v868, 1
      %v870 = vadd.f32 %v868, %v869
      %v871 = vrsqrt.pop %v870
      %v872 = vmul.f32 %v870, %v871
      %vm873 = vcmp.eq.f32.partialorder %v870, inf
      %v874 = vsel %vm873, %v870, %v872
      %vm875 = vcmp.eq.f32.partialorder %v870, 0.0
      %v876 = vand.u32 %v870, 2147483648
      %v877 = vsel %vm875, %v876, %v874
      %vm878 = vcmp.gt.f32.partialorder %v877, 1e-05
      %v879 = vrcp.pop %v877
      %v880 = vmul.f32 1e-05, %v879
      %v881 = vsel %vm878, %v880, 1.0
      %v882 = vmul.f32 %v881, 100000.0
      %v883 = vsub.f32 %v863, %v855
      %v884 = vand.u32 2147483647, %v883
      %v885 = vmul.f32 %v882, %v884
      %p886 = scmp.lt.s32.totalorder %s553, 8
      %s887 = scalar_select %p886, 1, 0
      %v888 = vstv %s887
      %vm889 = vcmp.eq.s32.totalorder %v888, 1
      %v890 = vsel %vm889, %v885, 0.0
      %v891 = vadd.f32 %v552, %v890
      %s892 = sadd.s32 %s208, 2
      %p893 = scmp.lt.s32.totalorder %s892, 7
      %s894 = scalar_select %p893, %s892, 7
      %s895 = scalar_lea.vmem %s0, %s894
      %v896 = vld [vmem:[%s895] sm:$0x1]
      %v897 = vmul.f32 %v896, %v896
      %v898 = vsel %vm214, %v897, 0.0
      %899 = vadd.xlane.f32.xlu0 %v898
      %v900 = vpop.xlane.xlu0 %899
      %v902 = vsel %vm123, %v896, 0
      %904 = vmatprep.subr.mxu0 0.0
      %905 = vmatpush1.xpose.msra.mxu0 0.0
      %906 = vmatprep.subr.mxu0 0.0
      %907 = vmatpush1.xpose.msra.mxu0 0.0
      %908 = vmatprep.subr.mxu0 0.0
      %909 = vmatpush1.xpose.msra.mxu0 0.0
      %910 = vmatprep.subr.mxu0 0.0
      %911 = vmatpush1.xpose.msra.mxu0 0.0
      %912 = vmatprep.subr.mxu0 0.0
      %913 = vmatpush1.xpose.msra.mxu0 0.0
      %914 = vmatprep.subr.mxu0 0.0
      %915 = vmatpush1.xpose.msra.mxu0 0.0
      %916 = vmatprep.subr.mxu0 0.0
      %917 = vmatpush1.xpose.msra.mxu0 0.0
      %918 = vmatprep.subr.mxu0 0.0
      %919 = vmatpush1.xpose.msra.mxu0 0.0
      %920 = vmatprep.subr.mxu0 0.0
      %921 = vmatpush1.xpose.msra.mxu0 0.0
      %922 = vmatprep.subr.mxu0 0.0
      %923 = vmatpush1.xpose.msra.mxu0 0.0
      %924 = vmatprep.subr.mxu0 0.0
      %925 = vmatpush1.xpose.msra.mxu0 0.0
      %926 = vmatprep.subr.mxu0 0.0
      %927 = vmatpush1.xpose.msra.mxu0 0.0
      %928 = vmatprep.subr.mxu0 0.0
      %929 = vmatpush1.xpose.msra.mxu0 0.0
      %930 = vmatprep.subr.mxu0 0.0
      %931 = vmatpush1.xpose.msra.mxu0 0.0
      %932 = vmatprep.subr.mxu0 0.0
      %933 = vmatpush1.xpose.msra.mxu0 0.0
      %934 = vmatprep.subr.mxu0 0.0
      %935 = vmatpush1.xpose.msra.mxu0 %v222
      %936 = vmatprep.subr.mxu0 0.0
      %937 = vmatpush2.xpose.msra.mxu0 0.0
      %938 = vmatprep.subr.mxu0 0.0
      %939 = vmatpush2.xpose.msra.mxu0 0.0
      %940 = vmatprep.subr.mxu0 0.0
      %941 = vmatpush2.xpose.msra.mxu0 0.0
      %942 = vmatprep.subr.mxu0 0.0
      %943 = vmatpush2.xpose.msra.mxu0 0.0
      %944 = vmatprep.subr.mxu0 0.0
      %945 = vmatpush2.xpose.msra.mxu0 0.0
      %946 = vmatprep.subr.mxu0 0.0
      %947 = vmatpush2.xpose.msra.mxu0 0.0
      %948 = vmatprep.subr.mxu0 0.0
      %949 = vmatpush2.xpose.msra.mxu0 0.0
      %950 = vmatprep.subr.mxu0 0.0
      %951 = vmatpush2.xpose.msra.mxu0 0.0
      %952 = vmatprep.subr.mxu0 0.0
      %953 = vmatpush2.xpose.msra.mxu0 0.0
      %954 = vmatprep.subr.mxu0 0.0
      %955 = vmatpush2.xpose.msra.mxu0 0.0
      %956 = vmatprep.subr.mxu0 0.0
      %957 = vmatpush2.xpose.msra.mxu0 0.0
      %958 = vmatprep.subr.mxu0 0.0
      %959 = vmatpush2.xpose.msra.mxu0 0.0
      %960 = vmatprep.subr.mxu0 0.0
      %961 = vmatpush2.xpose.msra.mxu0 0.0
      %962 = vmatprep.subr.mxu0 0.0
      %963 = vmatpush2.xpose.msra.mxu0 0.0
      %964 = vmatprep.subr.mxu0 0.0
      %965 = vmatpush2.xpose.msra.mxu0 0.0
      %966 = vmatprep.subr.mxu0 0.0
      %967 = vmatpush2.xpose.msra.mxu0 0.0
      %968 = vmatprep.mubr.f32.mxu0 0.0
      %969 = vmatmul.mubr.f32.gmra.mxu0 %v902
      %v970 = vpop.f32.mrf.mxu0
      %v971 = vadd.f32 0.0, %v970
      %v972 = vpop.f32.mrf.mxu0
      %973 = vdwg.mxu0
      %v974 = vlaneseq
      %v975 = vshrl.u32 %v974, 7
      %v976 = vsub.s32 0, %v975
      %v977 = vrot.slane %v896, %v976
      %v978 = vmul.f32 %v120, %v977
      %v979 = vsel %vm123, %v978, 0.0
      %980 = vadd.xlane.f32.xlu0 %v979
      %v981 = vpop.xlane.xlu0 %980
      %v982 = vadd.f32 %v200, %v900
      %v983 = vmul.f32 %v971, 2.0
      %v984 = vsub.f32 %v982, %v983
      %v985 = vmax.f32 %v984, 1e-12
      %v986 = vrsqrt.pop %v985
      %v987 = vmul.f32 %v985, %v986
      %vm988 = vcmp.eq.f32.partialorder %v985, inf
      %v989 = vsel %vm988, %v985, %v987
      %vm990 = vcmp.eq.f32.partialorder %v985, 0.0
      %v991 = vand.u32 %v985, 2147483648
      %v992 = vsel %vm990, %v991, %v989
      %v993 = vlaneseq
      %v994 = vshrl.u32 %v993, 7
      %v995 = vsub.s32 0, %v994
      %v996 = vrot.slane %v900, %v995
      %v997 = vadd.f32 %v126, %v996
      %v998 = vmul.f32 %v981, 2.0
      %v999 = vsub.f32 %v997, %v998
      %v1000 = vmax.f32 %v999, 1e-12
      %v1001 = vrsqrt.pop %v1000
      %v1002 = vmul.f32 %v1000, %v1001
      %vm1003 = vcmp.eq.f32.partialorder %v1000, inf
      %v1004 = vsel %vm1003, %v1000, %v1002
      %vm1005 = vcmp.eq.f32.partialorder %v1000, 0.0
      %v1006 = vand.u32 %v1000, 2147483648
      %v1007 = vsel %vm1005, %v1006, %v1004
      %s1008 = scalar_lea.vmem %s1, %s894
      %v1009 = vld [vmem:[%s1008] sm:$0x1]
      %v1010 = vlaneseq
      %v1011 = vshrl.u32 %v1010, 7
      %v1012 = vsub.s32 0, %v1011
      %v1013 = vrot.slane %v1009, %v1012
      %vm1014 = vcmp.eq.s32.totalorder %v121, %v1013
      %v1015 = vsel %vm1014, 1, 0
      %v1016 = vcvt.s32.f32 %v1015
      %v1017 = vlaneseq
      %v1018 = vshrl.u32 %v1017, 7
      %v1019 = vsub.s32 0, %v1018
      %v1020 = vrot.slane %v992, %v1019
      %vm1021 = vcmp.ge.f32.partialorder %v1020, %v1007
      %vm1022 = vmor %vm207, %vm1021
      %v1023 = vsel %vm1022, 1.0, 0.0
      %v1025 = vsel %vm344, %v1023, 0
      %1027 = vmatprep.subr.mxu0 0.0
      %1028 = vmatpush1.msra.mxu0 0.0
      %1029 = vmatprep.subr.mxu0 0.0
      %1030 = vmatpush1.msra.mxu0 0.0
      %1031 = vmatprep.subr.mxu0 0.0
      %1032 = vmatpush1.msra.mxu0 0.0
      %1033 = vmatprep.subr.mxu0 0.0
      %1034 = vmatpush1.msra.mxu0 0.0
      %1035 = vmatprep.subr.mxu0 0.0
      %1036 = vmatpush1.msra.mxu0 0.0
      %1037 = vmatprep.subr.mxu0 0.0
      %1038 = vmatpush1.msra.mxu0 0.0
      %1039 = vmatprep.subr.mxu0 0.0
      %1040 = vmatpush1.msra.mxu0 0.0
      %1041 = vmatprep.subr.mxu0 0.0
      %1042 = vmatpush1.msra.mxu0 0.0
      %1043 = vmatprep.subr.mxu0 0.0
      %1044 = vmatpush1.msra.mxu0 0.0
      %1045 = vmatprep.subr.mxu0 0.0
      %1046 = vmatpush1.msra.mxu0 0.0
      %1047 = vmatprep.subr.mxu0 0.0
      %1048 = vmatpush1.msra.mxu0 0.0
      %1049 = vmatprep.subr.mxu0 0.0
      %1050 = vmatpush1.msra.mxu0 0.0
      %1051 = vmatprep.subr.mxu0 0.0
      %1052 = vmatpush1.msra.mxu0 0.0
      %1053 = vmatprep.subr.mxu0 0.0
      %1054 = vmatpush1.msra.mxu0 0.0
      %1055 = vmatprep.subr.mxu0 0.0
      %1056 = vmatpush1.msra.mxu0 0.0
      %1057 = vmatprep.subr.mxu0 0.0
      %1058 = vmatpush1.msra.mxu0 %v1016
      %1059 = vmatprep.subr.mxu0 0.0
      %1060 = vmatpush2.msra.mxu0 0.0
      %1061 = vmatprep.subr.mxu0 0.0
      %1062 = vmatpush2.msra.mxu0 0.0
      %1063 = vmatprep.subr.mxu0 0.0
      %1064 = vmatpush2.msra.mxu0 0.0
      %1065 = vmatprep.subr.mxu0 0.0
      %1066 = vmatpush2.msra.mxu0 0.0
      %1067 = vmatprep.subr.mxu0 0.0
      %1068 = vmatpush2.msra.mxu0 0.0
      %1069 = vmatprep.subr.mxu0 0.0
      %1070 = vmatpush2.msra.mxu0 0.0
      %1071 = vmatprep.subr.mxu0 0.0
      %1072 = vmatpush2.msra.mxu0 0.0
      %1073 = vmatprep.subr.mxu0 0.0
      %1074 = vmatpush2.msra.mxu0 0.0
      %1075 = vmatprep.subr.mxu0 0.0
      %1076 = vmatpush2.msra.mxu0 0.0
      %1077 = vmatprep.subr.mxu0 0.0
      %1078 = vmatpush2.msra.mxu0 0.0
      %1079 = vmatprep.subr.mxu0 0.0
      %1080 = vmatpush2.msra.mxu0 0.0
      %1081 = vmatprep.subr.mxu0 0.0
      %1082 = vmatpush2.msra.mxu0 0.0
      %1083 = vmatprep.subr.mxu0 0.0
      %1084 = vmatpush2.msra.mxu0 0.0
      %1085 = vmatprep.subr.mxu0 0.0
      %1086 = vmatpush2.msra.mxu0 0.0
      %1087 = vmatprep.subr.mxu0 0.0
      %1088 = vmatpush2.msra.mxu0 0.0
      %1089 = vmatprep.subr.mxu0 0.0
      %1090 = vmatpush2.msra.mxu0 0.0
      %1091 = vmatprep.mubr.f32.mxu0 0.0
      %1092 = vmatmul.mubr.f32.gmra.mxu0 %v1025
      %v1093 = vpop.f32.mrf.mxu0
      %v1094 = vadd.f32 0.0, %v1093
      %v1095 = vpop.f32.mrf.mxu0
      %1096 = vdwg.mxu0
      %v1097 = vsub.f32 1.0, %v1016
      %1098 = vmatprep.subr.mxu0 0.0
      %1099 = vmatpush1.msra.mxu0 0.0
      %1100 = vmatprep.subr.mxu0 0.0
      %1101 = vmatpush1.msra.mxu0 0.0
      %1102 = vmatprep.subr.mxu0 0.0
      %1103 = vmatpush1.msra.mxu0 0.0
      %1104 = vmatprep.subr.mxu0 0.0
      %1105 = vmatpush1.msra.mxu0 0.0
      %1106 = vmatprep.subr.mxu0 0.0
      %1107 = vmatpush1.msra.mxu0 0.0
      %1108 = vmatprep.subr.mxu0 0.0
      %1109 = vmatpush1.msra.mxu0 0.0
      %1110 = vmatprep.subr.mxu0 0.0
      %1111 = vmatpush1.msra.mxu0 0.0
      %1112 = vmatprep.subr.mxu0 0.0
      %1113 = vmatpush1.msra.mxu0 0.0
      %1114 = vmatprep.subr.mxu0 0.0
      %1115 = vmatpush1.msra.mxu0 0.0
      %1116 = vmatprep.subr.mxu0 0.0
      %1117 = vmatpush1.msra.mxu0 0.0
      %1118 = vmatprep.subr.mxu0 0.0
      %1119 = vmatpush1.msra.mxu0 0.0
      %1120 = vmatprep.subr.mxu0 0.0
      %1121 = vmatpush1.msra.mxu0 0.0
      %1122 = vmatprep.subr.mxu0 0.0
      %1123 = vmatpush1.msra.mxu0 0.0
      %1124 = vmatprep.subr.mxu0 0.0
      %1125 = vmatpush1.msra.mxu0 0.0
      %1126 = vmatprep.subr.mxu0 0.0
      %1127 = vmatpush1.msra.mxu0 0.0
      %1128 = vmatprep.subr.mxu0 0.0
      %1129 = vmatpush1.msra.mxu0 %v1097
      %1130 = vmatprep.subr.mxu0 0.0
      %1131 = vmatpush2.msra.mxu0 0.0
      %1132 = vmatprep.subr.mxu0 0.0
      %1133 = vmatpush2.msra.mxu0 0.0
      %1134 = vmatprep.subr.mxu0 0.0
      %1135 = vmatpush2.msra.mxu0 0.0
      %1136 = vmatprep.subr.mxu0 0.0
      %1137 = vmatpush2.msra.mxu0 0.0
      %1138 = vmatprep.subr.mxu0 0.0
      %1139 = vmatpush2.msra.mxu0 0.0
      %1140 = vmatprep.subr.mxu0 0.0
      %1141 = vmatpush2.msra.mxu0 0.0
      %1142 = vmatprep.subr.mxu0 0.0
      %1143 = vmatpush2.msra.mxu0 0.0
      %1144 = vmatprep.subr.mxu0 0.0
      %1145 = vmatpush2.msra.mxu0 0.0
      %1146 = vmatprep.subr.mxu0 0.0
      %1147 = vmatpush2.msra.mxu0 0.0
      %1148 = vmatprep.subr.mxu0 0.0
      %1149 = vmatpush2.msra.mxu0 0.0
      %1150 = vmatprep.subr.mxu0 0.0
      %1151 = vmatpush2.msra.mxu0 0.0
      %1152 = vmatprep.subr.mxu0 0.0
      %1153 = vmatpush2.msra.mxu0 0.0
      %1154 = vmatprep.subr.mxu0 0.0
      %1155 = vmatpush2.msra.mxu0 0.0
      %1156 = vmatprep.subr.mxu0 0.0
      %1157 = vmatpush2.msra.mxu0 0.0
      %1158 = vmatprep.subr.mxu0 0.0
      %1159 = vmatpush2.msra.mxu0 0.0
      %1160 = vmatprep.subr.mxu0 0.0
      %1161 = vmatpush2.msra.mxu0 0.0
      %1162 = vmatprep.mubr.f32.mxu0 0.0
      %1163 = vmatmul.mubr.f32.gmra.mxu0 %v1025
      %v1164 = vpop.f32.mrf.mxu0
      %v1165 = vadd.f32 0.0, %v1164
      %v1166 = vpop.f32.mrf.mxu0
      %1167 = vdwg.mxu0
      %v1168 = vsel %vm489, %v1016, 0.0
      %v1169 = vrot.slane %v1168, 4
      %v1170 = vadd.f32 %v1168, %v1169
      %v1171 = vrot.slane %v1170, 2
      %v1172 = vadd.f32 %v1170, %v1171
      %v1173 = vrot.slane %v1172, 1
      %v1174 = vadd.f32 %v1172, %v1173
      %v1175 = vmul.f32 %v1174, 0.5
      %v1176 = vfloor.f32 %v1175
      %v1177 = vsub.f32 8.0, %v1174
      %v1178 = vmul.f32 %v1177, 0.5
      %v1179 = vfloor.f32 %v1178
      %v1180 = vsub.f32 %v1176, 0.5
      %vm1181 = vcmp.ge.f32.partialorder %v1094, %v1180
      %vm1182 = vmand %vm1014, %vm1181
      %vm1183 = vmxor %vm1014, 1
      %v1184 = vsub.f32 %v1179, 0.5
      %vm1185 = vcmp.ge.f32.partialorder %v1165, %v1184
      %vm1186 = vmand %vm1183, %vm1185
      %v1187 = vsel %vm1182, %v1007, -1e+30
      %v1188 = vsel %vm489, %v1187, -inf
      %v1189 = vrot.slane %v1188, 4
      %v1190 = vmax.f32 %v1188, %v1189
      %v1191 = vrot.slane %v1190, 2
      %v1192 = vmax.f32 %v1190, %v1191
      %v1193 = vrot.slane %v1192, 1
      %v1194 = vmax.f32 %v1192, %v1193
      %v1195 = vsel %vm1186, %v1007, -1e+30
      %v1196 = vsel %vm489, %v1195, -inf
      %v1197 = vrot.slane %v1196, 4
      %v1198 = vmax.f32 %v1196, %v1197
      %v1199 = vrot.slane %v1198, 2
      %v1200 = vmax.f32 %v1198, %v1199
      %v1201 = vrot.slane %v1200, 1
      %v1202 = vmax.f32 %v1200, %v1201
      %v1203 = vmul.f32 %v1007, %v1007
      %v1204 = vrot.slane %v1203, 4
      %v1205 = vadd.f32 %v1203, %v1204
      %v1206 = vrot.slane %v1205, 2
      %v1207 = vadd.f32 %v1205, %v1206
      %v1208 = vrot.slane %v1207, 1
      %v1209 = vadd.f32 %v1207, %v1208
      %v1210 = vrsqrt.pop %v1209
      %v1211 = vmul.f32 %v1209, %v1210
      %vm1212 = vcmp.eq.f32.partialorder %v1209, inf
      %v1213 = vsel %vm1212, %v1209, %v1211
      %vm1214 = vcmp.eq.f32.partialorder %v1209, 0.0
      %v1215 = vand.u32 %v1209, 2147483648
      %v1216 = vsel %vm1214, %v1215, %v1213
      %vm1217 = vcmp.gt.f32.partialorder %v1216, 1e-05
      %v1218 = vrcp.pop %v1216
      %v1219 = vmul.f32 1e-05, %v1218
      %v1220 = vsel %vm1217, %v1219, 1.0
      %v1221 = vmul.f32 %v1220, 100000.0
      %v1222 = vsub.f32 %v1202, %v1194
      %v1223 = vand.u32 2147483647, %v1222
      %v1224 = vmul.f32 %v1221, %v1223
      %p1225 = scmp.lt.s32.totalorder %s892, 8
      %s1226 = scalar_select %p1225, 1, 0
      %v1227 = vstv %s1226
      %vm1228 = vcmp.eq.s32.totalorder %v1227, 1
      %v1229 = vsel %vm1228, %v1224, 0.0
      %v1230 = vadd.f32 %v891, %v1229
      %s1231 = sadd.s32 %s208, 3
      %p1232 = scmp.lt.s32.totalorder %s1231, 7
      %s1233 = scalar_select %p1232, %s1231, 7
      %s1234 = scalar_lea.vmem %s0, %s1233
      %v1235 = vld [vmem:[%s1234] sm:$0x1]
      %v1236 = vmul.f32 %v1235, %v1235
      %v1237 = vsel %vm214, %v1236, 0.0
      %1238 = vadd.xlane.f32.xlu0 %v1237
      %v1239 = vpop.xlane.xlu0 %1238
      %v1241 = vsel %vm123, %v1235, 0
      %1243 = vmatprep.subr.mxu0 0.0
      %1244 = vmatpush1.xpose.msra.mxu0 0.0
      %1245 = vmatprep.subr.mxu0 0.0
      %1246 = vmatpush1.xpose.msra.mxu0 0.0
      %1247 = vmatprep.subr.mxu0 0.0
      %1248 = vmatpush1.xpose.msra.mxu0 0.0
      %1249 = vmatprep.subr.mxu0 0.0
      %1250 = vmatpush1.xpose.msra.mxu0 0.0
      %1251 = vmatprep.subr.mxu0 0.0
      %1252 = vmatpush1.xpose.msra.mxu0 0.0
      %1253 = vmatprep.subr.mxu0 0.0
      %1254 = vmatpush1.xpose.msra.mxu0 0.0
      %1255 = vmatprep.subr.mxu0 0.0
      %1256 = vmatpush1.xpose.msra.mxu0 0.0
      %1257 = vmatprep.subr.mxu0 0.0
      %1258 = vmatpush1.xpose.msra.mxu0 0.0
      %1259 = vmatprep.subr.mxu0 0.0
      %1260 = vmatpush1.xpose.msra.mxu0 0.0
      %1261 = vmatprep.subr.mxu0 0.0
      %1262 = vmatpush1.xpose.msra.mxu0 0.0
      %1263 = vmatprep.subr.mxu0 0.0
      %1264 = vmatpush1.xpose.msra.mxu0 0.0
      %1265 = vmatprep.subr.mxu0 0.0
      %1266 = vmatpush1.xpose.msra.mxu0 0.0
      %1267 = vmatprep.subr.mxu0 0.0
      %1268 = vmatpush1.xpose.msra.mxu0 0.0
      %1269 = vmatprep.subr.mxu0 0.0
      %1270 = vmatpush1.xpose.msra.mxu0 0.0
      %1271 = vmatprep.subr.mxu0 0.0
      %1272 = vmatpush1.xpose.msra.mxu0 0.0
      %1273 = vmatprep.subr.mxu0 0.0
      %1274 = vmatpush1.xpose.msra.mxu0 %v222
      %1275 = vmatprep.subr.mxu0 0.0
      %1276 = vmatpush2.xpose.msra.mxu0 0.0
      %1277 = vmatprep.subr.mxu0 0.0
      %1278 = vmatpush2.xpose.msra.mxu0 0.0
      %1279 = vmatprep.subr.mxu0 0.0
      %1280 = vmatpush2.xpose.msra.mxu0 0.0
      %1281 = vmatprep.subr.mxu0 0.0
      %1282 = vmatpush2.xpose.msra.mxu0 0.0
      %1283 = vmatprep.subr.mxu0 0.0
      %1284 = vmatpush2.xpose.msra.mxu0 0.0
      %1285 = vmatprep.subr.mxu0 0.0
      %1286 = vmatpush2.xpose.msra.mxu0 0.0
      %1287 = vmatprep.subr.mxu0 0.0
      %1288 = vmatpush2.xpose.msra.mxu0 0.0
      %1289 = vmatprep.subr.mxu0 0.0
      %1290 = vmatpush2.xpose.msra.mxu0 0.0
      %1291 = vmatprep.subr.mxu0 0.0
      %1292 = vmatpush2.xpose.msra.mxu0 0.0
      %1293 = vmatprep.subr.mxu0 0.0
      %1294 = vmatpush2.xpose.msra.mxu0 0.0
      %1295 = vmatprep.subr.mxu0 0.0
      %1296 = vmatpush2.xpose.msra.mxu0 0.0
      %1297 = vmatprep.subr.mxu0 0.0
      %1298 = vmatpush2.xpose.msra.mxu0 0.0
      %1299 = vmatprep.subr.mxu0 0.0
      %1300 = vmatpush2.xpose.msra.mxu0 0.0
      %1301 = vmatprep.subr.mxu0 0.0
      %1302 = vmatpush2.xpose.msra.mxu0 0.0
      %1303 = vmatprep.subr.mxu0 0.0
      %1304 = vmatpush2.xpose.msra.mxu0 0.0
      %1305 = vmatprep.subr.mxu0 0.0
      %1306 = vmatpush2.xpose.msra.mxu0 0.0
      %1307 = vmatprep.mubr.f32.mxu0 0.0
      %1308 = vmatmul.mubr.f32.gmra.mxu0 %v1241
      %v1309 = vpop.f32.mrf.mxu0
      %v1310 = vadd.f32 0.0, %v1309
      %v1311 = vpop.f32.mrf.mxu0
      %1312 = vdwg.mxu0
      %v1313 = vlaneseq
      %v1314 = vshrl.u32 %v1313, 7
      %v1315 = vsub.s32 0, %v1314
      %v1316 = vrot.slane %v1235, %v1315
      %v1317 = vmul.f32 %v120, %v1316
      %v1318 = vsel %vm123, %v1317, 0.0
      %1319 = vadd.xlane.f32.xlu0 %v1318
      %v1320 = vpop.xlane.xlu0 %1319
      %v1321 = vadd.f32 %v200, %v1239
      %v1322 = vmul.f32 %v1310, 2.0
      %v1323 = vsub.f32 %v1321, %v1322
      %v1324 = vmax.f32 %v1323, 1e-12
      %v1325 = vrsqrt.pop %v1324
      %v1326 = vmul.f32 %v1324, %v1325
      %vm1327 = vcmp.eq.f32.partialorder %v1324, inf
      %v1328 = vsel %vm1327, %v1324, %v1326
      %vm1329 = vcmp.eq.f32.partialorder %v1324, 0.0
      %v1330 = vand.u32 %v1324, 2147483648
      %v1331 = vsel %vm1329, %v1330, %v1328
      %v1332 = vlaneseq
      %v1333 = vshrl.u32 %v1332, 7
      %v1334 = vsub.s32 0, %v1333
      %v1335 = vrot.slane %v1239, %v1334
      %v1336 = vadd.f32 %v126, %v1335
      %v1337 = vmul.f32 %v1320, 2.0
      %v1338 = vsub.f32 %v1336, %v1337
      %v1339 = vmax.f32 %v1338, 1e-12
      %v1340 = vrsqrt.pop %v1339
      %v1341 = vmul.f32 %v1339, %v1340
      %vm1342 = vcmp.eq.f32.partialorder %v1339, inf
      %v1343 = vsel %vm1342, %v1339, %v1341
      %vm1344 = vcmp.eq.f32.partialorder %v1339, 0.0
      %v1345 = vand.u32 %v1339, 2147483648
      %v1346 = vsel %vm1344, %v1345, %v1343
      %s1347 = scalar_lea.vmem %s1, %s1233
      %v1348 = vld [vmem:[%s1347] sm:$0x1]
      %v1349 = vlaneseq
      %v1350 = vshrl.u32 %v1349, 7
      %v1351 = vsub.s32 0, %v1350
      %v1352 = vrot.slane %v1348, %v1351
      %vm1353 = vcmp.eq.s32.totalorder %v121, %v1352
      %v1354 = vsel %vm1353, 1, 0
      %v1355 = vcvt.s32.f32 %v1354
      %v1356 = vlaneseq
      %v1357 = vshrl.u32 %v1356, 7
      %v1358 = vsub.s32 0, %v1357
      %v1359 = vrot.slane %v1331, %v1358
      %vm1360 = vcmp.ge.f32.partialorder %v1359, %v1346
      %vm1361 = vmor %vm207, %vm1360
      %v1362 = vsel %vm1361, 1.0, 0.0
      %v1364 = vsel %vm344, %v1362, 0
      %1366 = vmatprep.subr.mxu0 0.0
      %1367 = vmatpush1.msra.mxu0 0.0
      %1368 = vmatprep.subr.mxu0 0.0
      %1369 = vmatpush1.msra.mxu0 0.0
      %1370 = vmatprep.subr.mxu0 0.0
      %1371 = vmatpush1.msra.mxu0 0.0
      %1372 = vmatprep.subr.mxu0 0.0
      %1373 = vmatpush1.msra.mxu0 0.0
      %1374 = vmatprep.subr.mxu0 0.0
      %1375 = vmatpush1.msra.mxu0 0.0
      %1376 = vmatprep.subr.mxu0 0.0
      %1377 = vmatpush1.msra.mxu0 0.0
      %1378 = vmatprep.subr.mxu0 0.0
      %1379 = vmatpush1.msra.mxu0 0.0
      %1380 = vmatprep.subr.mxu0 0.0
      %1381 = vmatpush1.msra.mxu0 0.0
      %1382 = vmatprep.subr.mxu0 0.0
      %1383 = vmatpush1.msra.mxu0 0.0
      %1384 = vmatprep.subr.mxu0 0.0
      %1385 = vmatpush1.msra.mxu0 0.0
      %1386 = vmatprep.subr.mxu0 0.0
      %1387 = vmatpush1.msra.mxu0 0.0
      %1388 = vmatprep.subr.mxu0 0.0
      %1389 = vmatpush1.msra.mxu0 0.0
      %1390 = vmatprep.subr.mxu0 0.0
      %1391 = vmatpush1.msra.mxu0 0.0
      %1392 = vmatprep.subr.mxu0 0.0
      %1393 = vmatpush1.msra.mxu0 0.0
      %1394 = vmatprep.subr.mxu0 0.0
      %1395 = vmatpush1.msra.mxu0 0.0
      %1396 = vmatprep.subr.mxu0 0.0
      %1397 = vmatpush1.msra.mxu0 %v1355
      %1398 = vmatprep.subr.mxu0 0.0
      %1399 = vmatpush2.msra.mxu0 0.0
      %1400 = vmatprep.subr.mxu0 0.0
      %1401 = vmatpush2.msra.mxu0 0.0
      %1402 = vmatprep.subr.mxu0 0.0
      %1403 = vmatpush2.msra.mxu0 0.0
      %1404 = vmatprep.subr.mxu0 0.0
      %1405 = vmatpush2.msra.mxu0 0.0
      %1406 = vmatprep.subr.mxu0 0.0
      %1407 = vmatpush2.msra.mxu0 0.0
      %1408 = vmatprep.subr.mxu0 0.0
      %1409 = vmatpush2.msra.mxu0 0.0
      %1410 = vmatprep.subr.mxu0 0.0
      %1411 = vmatpush2.msra.mxu0 0.0
      %1412 = vmatprep.subr.mxu0 0.0
      %1413 = vmatpush2.msra.mxu0 0.0
      %1414 = vmatprep.subr.mxu0 0.0
      %1415 = vmatpush2.msra.mxu0 0.0
      %1416 = vmatprep.subr.mxu0 0.0
      %1417 = vmatpush2.msra.mxu0 0.0
      %1418 = vmatprep.subr.mxu0 0.0
      %1419 = vmatpush2.msra.mxu0 0.0
      %1420 = vmatprep.subr.mxu0 0.0
      %1421 = vmatpush2.msra.mxu0 0.0
      %1422 = vmatprep.subr.mxu0 0.0
      %1423 = vmatpush2.msra.mxu0 0.0
      %1424 = vmatprep.subr.mxu0 0.0
      %1425 = vmatpush2.msra.mxu0 0.0
      %1426 = vmatprep.subr.mxu0 0.0
      %1427 = vmatpush2.msra.mxu0 0.0
      %1428 = vmatprep.subr.mxu0 0.0
      %1429 = vmatpush2.msra.mxu0 0.0
      %1430 = vmatprep.mubr.f32.mxu0 0.0
      %1431 = vmatmul.mubr.f32.gmra.mxu0 %v1364
      %v1432 = vpop.f32.mrf.mxu0
      %v1433 = vadd.f32 0.0, %v1432
      %v1434 = vpop.f32.mrf.mxu0
      %1435 = vdwg.mxu0
      %v1436 = vsub.f32 1.0, %v1355
      %1437 = vmatprep.subr.mxu0 0.0
      %1438 = vmatpush1.msra.mxu0 0.0
      %1439 = vmatprep.subr.mxu0 0.0
      %1440 = vmatpush1.msra.mxu0 0.0
      %1441 = vmatprep.subr.mxu0 0.0
      %1442 = vmatpush1.msra.mxu0 0.0
      %1443 = vmatprep.subr.mxu0 0.0
      %1444 = vmatpush1.msra.mxu0 0.0
      %1445 = vmatprep.subr.mxu0 0.0
      %1446 = vmatpush1.msra.mxu0 0.0
      %1447 = vmatprep.subr.mxu0 0.0
      %1448 = vmatpush1.msra.mxu0 0.0
      %1449 = vmatprep.subr.mxu0 0.0
      %1450 = vmatpush1.msra.mxu0 0.0
      %1451 = vmatprep.subr.mxu0 0.0
      %1452 = vmatpush1.msra.mxu0 0.0
      %1453 = vmatprep.subr.mxu0 0.0
      %1454 = vmatpush1.msra.mxu0 0.0
      %1455 = vmatprep.subr.mxu0 0.0
      %1456 = vmatpush1.msra.mxu0 0.0
      %1457 = vmatprep.subr.mxu0 0.0
      %1458 = vmatpush1.msra.mxu0 0.0
      %1459 = vmatprep.subr.mxu0 0.0
      %1460 = vmatpush1.msra.mxu0 0.0
      %1461 = vmatprep.subr.mxu0 0.0
      %1462 = vmatpush1.msra.mxu0 0.0
      %1463 = vmatprep.subr.mxu0 0.0
      %1464 = vmatpush1.msra.mxu0 0.0
      %1465 = vmatprep.subr.mxu0 0.0
      %1466 = vmatpush1.msra.mxu0 0.0
      %1467 = vmatprep.subr.mxu0 0.0
      %1468 = vmatpush1.msra.mxu0 %v1436
      %1469 = vmatprep.subr.mxu0 0.0
      %1470 = vmatpush2.msra.mxu0 0.0
      %1471 = vmatprep.subr.mxu0 0.0
      %1472 = vmatpush2.msra.mxu0 0.0
      %1473 = vmatprep.subr.mxu0 0.0
      %1474 = vmatpush2.msra.mxu0 0.0
      %1475 = vmatprep.subr.mxu0 0.0
      %1476 = vmatpush2.msra.mxu0 0.0
      %1477 = vmatprep.subr.mxu0 0.0
      %1478 = vmatpush2.msra.mxu0 0.0
      %1479 = vmatprep.subr.mxu0 0.0
      %1480 = vmatpush2.msra.mxu0 0.0
      %1481 = vmatprep.subr.mxu0 0.0
      %1482 = vmatpush2.msra.mxu0 0.0
      %1483 = vmatprep.subr.mxu0 0.0
      %1484 = vmatpush2.msra.mxu0 0.0
      %1485 = vmatprep.subr.mxu0 0.0
      %1486 = vmatpush2.msra.mxu0 0.0
      %1487 = vmatprep.subr.mxu0 0.0
      %1488 = vmatpush2.msra.mxu0 0.0
      %1489 = vmatprep.subr.mxu0 0.0
      %1490 = vmatpush2.msra.mxu0 0.0
      %1491 = vmatprep.subr.mxu0 0.0
      %1492 = vmatpush2.msra.mxu0 0.0
      %1493 = vmatprep.subr.mxu0 0.0
      %1494 = vmatpush2.msra.mxu0 0.0
      %1495 = vmatprep.subr.mxu0 0.0
      %1496 = vmatpush2.msra.mxu0 0.0
      %1497 = vmatprep.subr.mxu0 0.0
      %1498 = vmatpush2.msra.mxu0 0.0
      %1499 = vmatprep.subr.mxu0 0.0
      %1500 = vmatpush2.msra.mxu0 0.0
      %1501 = vmatprep.mubr.f32.mxu0 0.0
      %1502 = vmatmul.mubr.f32.gmra.mxu0 %v1364
      %v1503 = vpop.f32.mrf.mxu0
      %v1504 = vadd.f32 0.0, %v1503
      %v1505 = vpop.f32.mrf.mxu0
      %1506 = vdwg.mxu0
      %v1507 = vsel %vm489, %v1355, 0.0
      %v1508 = vrot.slane %v1507, 4
      %v1509 = vadd.f32 %v1507, %v1508
      %v1510 = vrot.slane %v1509, 2
      %v1511 = vadd.f32 %v1509, %v1510
      %v1512 = vrot.slane %v1511, 1
      %v1513 = vadd.f32 %v1511, %v1512
      %v1514 = vmul.f32 %v1513, 0.5
      %v1515 = vfloor.f32 %v1514
      %v1516 = vsub.f32 8.0, %v1513
      %v1517 = vmul.f32 %v1516, 0.5
      %v1518 = vfloor.f32 %v1517
      %v1519 = vsub.f32 %v1515, 0.5
      %vm1520 = vcmp.ge.f32.partialorder %v1433, %v1519
      %vm1521 = vmand %vm1353, %vm1520
      %vm1522 = vmxor %vm1353, 1
      %v1523 = vsub.f32 %v1518, 0.5
      %vm1524 = vcmp.ge.f32.partialorder %v1504, %v1523
      %vm1525 = vmand %vm1522, %vm1524
      %v1526 = vsel %vm1521, %v1346, -1e+30
      %v1527 = vsel %vm489, %v1526, -inf
      %v1528 = vrot.slane %v1527, 4
      %v1529 = vmax.f32 %v1527, %v1528
      %v1530 = vrot.slane %v1529, 2
      %v1531 = vmax.f32 %v1529, %v1530
      %v1532 = vrot.slane %v1531, 1
      %v1533 = vmax.f32 %v1531, %v1532
      %v1534 = vsel %vm1525, %v1346, -1e+30
      %v1535 = vsel %vm489, %v1534, -inf
      %v1536 = vrot.slane %v1535, 4
      %v1537 = vmax.f32 %v1535, %v1536
      %v1538 = vrot.slane %v1537, 2
      %v1539 = vmax.f32 %v1537, %v1538
      %v1540 = vrot.slane %v1539, 1
      %v1541 = vmax.f32 %v1539, %v1540
      %v1542 = vmul.f32 %v1346, %v1346
      %v1543 = vrot.slane %v1542, 4
      %v1544 = vadd.f32 %v1542, %v1543
      %v1545 = vrot.slane %v1544, 2
      %v1546 = vadd.f32 %v1544, %v1545
      %v1547 = vrot.slane %v1546, 1
      %v1548 = vadd.f32 %v1546, %v1547
      %v1549 = vrsqrt.pop %v1548
      %v1550 = vmul.f32 %v1548, %v1549
      %vm1551 = vcmp.eq.f32.partialorder %v1548, inf
      %v1552 = vsel %vm1551, %v1548, %v1550
      %vm1553 = vcmp.eq.f32.partialorder %v1548, 0.0
      %v1554 = vand.u32 %v1548, 2147483648
      %v1555 = vsel %vm1553, %v1554, %v1552
      %vm1556 = vcmp.gt.f32.partialorder %v1555, 1e-05
      %v1557 = vrcp.pop %v1555
      %v1558 = vmul.f32 1e-05, %v1557
      %v1559 = vsel %vm1556, %v1558, 1.0
      %v1560 = vmul.f32 %v1559, 100000.0
      %v1561 = vsub.f32 %v1541, %v1533
      %v1562 = vand.u32 2147483647, %v1561
      %v1563 = vmul.f32 %v1560, %v1562
      %p1564 = scmp.lt.s32.totalorder %s1231, 8
      %s1565 = scalar_select %p1564, 1, 0
      %v1566 = vstv %s1565
      %vm1567 = vcmp.eq.s32.totalorder %v1566, 1
      %v1568 = vsel %vm1567, %v1563, 0.0
      %v1569 = vadd.f32 %v1230, %v1568
      %vm1570 = vcmask 0
      %1571 = vst.msk [vmem:[%s119] sm:$0x1] %vm1570, %v1569
      %p1572 = scmp.lt.s32.totalorder %s13, 1
      %s1573 = scalar_select %p1572, %s13, 1
      %s1574 = scalar_lea.vmem %s2, %s1573
      // Predicated region
      $region29: #{tpu_custom_call.1} parent=27 // pred_check
        %p1575 = pneg %p73
      $region30: #{tpu_custom_call.1} parent=27 // pred_check_branch
        %1577 = sbr.rel (%p1575) target = $region32
      $region31: #{tpu_custom_call.1} parent=27 // pred_region
        _
      $region32: #{tpu_custom_call.1} parent=27 // pred_fallthru
        _
    $region28: #{tpu_custom_call.1} parent=5 // pred_fallthru
      _
    %p1578 = scmp.le.s32.totalorder 2, %s8
    // Predicated region
    $region33: #{tpu_custom_call.1} parent=5 // pred_check
      %p1579 = pneg %p1578
    $region34: #{tpu_custom_call.1} parent=5 // pred_check_branch
      %1581 = sbr.rel (%p1579) target = $region36
    $region35: #{tpu_custom_call.1} parent=5 // pred_region
      %s1582 = ssub.s32 %s8, 2
      // Predicated region
      $region37: #{tpu_custom_call.1} parent=35 // pred_check
        %p1583 = pneg %p79
      $region38: #{tpu_custom_call.1} parent=35 // pred_check_branch
        %1585 = sbr.rel (%p1583) target = $region40
      $region39: #{tpu_custom_call.1} parent=35 // pred_region
        %p1586 = scmp.lt.s32.totalorder %s14, 1
        %s1587 = scalar_select %p1586, %s14, 1
        %s1588 = scalar_lea.vmem %s2, %s1587
      $region40: #{tpu_custom_call.1} parent=35 // pred_fallthru
        _
    $region36: #{tpu_custom_call.1} parent=5 // pred_fallthru
      _
  $region6: #{tpu_custom_call.1} parent=0 // loop_footer
    %s12 = sadd.s32 1, %s8
  $region7: #{tpu_custom_call.1} parent=0 // loop_footer_branch
    %7 = sbr.rel target = $region3
  $region8: #{tpu_custom_call.1} parent=0 // loop_exit
    _

</llo_original>
